<compile_context>
chip_gen: v6e
topology: v6e:2x2x1
jax: 0.10.0
libtpu: 0.0.40
codegen_flags: <defaults>
</compile_context>

<pallas_src>
import functools

import jax
import jax.numpy as jnp
from jax import lax
from jax.experimental import pallas as pl
from jax.experimental.pallas import tpu as pltpu


def _round_up(v, m):
    return -(-v // m) * m


def _choose_blocks(N, C, HW, itemsize, batch_block, channel_block):
    # Per-input-buffer VMEM budget (pipeline double-buffers it); keeps
    # 2x input + 2x output + f32 pad scratch well inside v7x's 64 MiB VMEM.
    budget = 6 << 20

    if batch_block is not None:
        Nb = batch_block
    elif N >= 2:
        Nb = 1
        for d in range(N // 2, 0, -1):        # largest divisor of N giving >= 2 batch steps
            if N % d == 0:
                Nb = d
                break
    else:
        Nb = N
    if N % Nb:
        raise ValueError("batch_block must divide N")

    if channel_block is not None:
        Ct = channel_block
    elif Nb * C * HW * itemsize <= budget:
        Ct = C
    else:
        Ct = None
        # largest divisor of C that is a multiple of 8 (BlockSpec sublane rule) and fits
        for d in range(C, 7, -1):
            if C % d == 0 and d % 8 == 0 and Nb * d * HW * itemsize <= budget:
                Ct = d
                break
        if Ct is None:
            Ct = 8 if C % 8 == 0 else C
    if C % Ct:
        raise ValueError("channel_block must divide C")
    return Nb, Ct


def _make_kernel(C, H, W, K, Nb, Ct, PB):
    P = K // 2
    HW = H * W
    PADW = HW + 2 * PB
    KK = K * K
    # channel sub-chunk for the in-step reduction (bounds vreg live ranges)
    CC = Ct
    if Ct > 8:
        CC = 8
        while Ct % CC:
            CC -= 1

    def kernel(x_ref, w_ref, o_ref, pad_ref):
        # x_ref  : (Nb, Ct, HW)   VMEM  channel chunk of the batch chunk
        # w_ref  : (2*K*K,)       SMEM  flat conv weight [chan, ky, kx]; chan0 pre-scaled 1/C
        # o_ref  : (Nb, 1, HW)    VMEM
        # pad_ref: (2, Nb, PADW)  VMEM  zero-padded running sum / running max planes
        ci = pl.program_id(1)
        nc = pl.num_programs(1)

        # ---- init running stats (first channel step of each batch chunk) -----------
        @pl.when(ci == 0)
        def _init():
            pad_ref[...] = jnp.zeros_like(pad_ref)
            pad_ref[1, :, PB:PB + HW] = jnp.full((Nb, HW), -jnp.inf, jnp.float32)

        # ---- accumulate channel sum / max over this Ct chunk ------------------------
        if CC == Ct:
            xc = x_ref[...]
            csum = jnp.sum(xc.astype(jnp.float32), axis=1)
            cmax = jnp.max(xc, axis=1).astype(jnp.float32)
        else:
            def chunk(i, carry):
                s_acc, m_acc = carry
                c0 = pl.multiple_of(i * CC, CC)
                xi = x_ref[:, pl.ds(c0, CC), :]
                s_acc = s_acc + jnp.sum(xi.astype(jnp.float32), axis=1)
                m_acc = jnp.maximum(m_acc, jnp.max(xi, axis=1).astype(jnp.float32))
                return s_acc, m_acc

            csum, cmax = lax.fori_loop(
                0, Ct // CC, chunk,
                (jnp.zeros((Nb, HW), jnp.float32),
                 jnp.full((Nb, HW), -jnp.inf, jnp.float32)),
                unroll=(Ct // CC) <= 8)

        # PB is a multiple of 128 -> these are lane-aligned, unmasked stores.
        pad_ref[0, :, PB:PB + HW] = pad_ref[0, :, PB:PB + HW] + csum
        pad_ref[1, :, PB:PB + HW] = jnp.maximum(pad_ref[1, :, PB:PB + HW], cmax)

        # ---- finalize: KxK conv over the two padded planes + sigmoid ----------------
        @pl.when(ci == nc - 1)
        def _finalize():
            # TODO(synk): for W >= 128 feature maps move this onto the MXU as banded
            # matmuls (per-(chan,ky) (W,W) band matrices); the VPU shift-and-scale
            # path is kept for small W where MXU occupancy would be poor.
            col = lax.broadcasted_iota(jnp.int32, (Nb, HW), 1) % W
            acc = jnp.zeros((Nb, HW), jnp.float32)
            for kx in range(K):
                dx = kx - P
                valid = jnp.logical_and(col + dx >= 0, col + dx < W)
                base = PB + dx - P * W            # >= 0 because PB >= P*(W+1)
                part = jnp.zeros((Nb, HW), jnp.float32)
                for s in range(2):
                    # one realigning window load per (stat-channel, kx)
                    q = pad_ref[s, :, base:base + HW + (K - 1) * W]
                    for ky in range(K):
                        wv = w_ref[s * KK + ky * K + kx]          # SMEM scalar
                        part = part + wv * q[:, ky * W:ky * W + HW]   # W-aligned slice
                acc = acc + jnp.where(valid, part, 0.0)   # NaN/inf-safe column mask
            # exact sigmoid kept (EUP-approx reciprocal would breach the 1e-5 check)
            o_ref[:, 0, :] = jax.nn.sigmoid(acc).astype(o_ref.dtype)

    return kernel


@functools.partial(jax.jit,
                   static_argnames=("kernel_size", "batch_block", "channel_block"))
def spatial_attention(x, weight, kernel_size=7, batch_block=None, channel_block=None):
    """x: (N, C, H, W); weight: (1, 2, K, K). Returns (N, 1, H, W)."""
    N, C, H, W = x.shape
    K = kernel_size
    P = K // 2
    HW = H * W
    itemsize = jnp.dtype(x.dtype).itemsize

    Nb, Ct = _choose_blocks(N, C, HW, itemsize, batch_block, channel_block)

    PB = _round_up(P * (W + 1), 128)      # flat zero-pad border, lane-aligned interior
    PADW = HW + 2 * PB

    x_flat = x.reshape(N, C, HW)          # lane-dense last dim
    # Fold the 1/C of the channel-mean into the channel-0 weights (free in-kernel).
    w = weight.astype(jnp.float32).reshape(2, K * K)
    w = w * jnp.array([1.0 / C, 1.0], jnp.float32)[:, None]
    w_flat = w.reshape(-1)

    kernel = _make_kernel(C, H, W, K, Nb, Ct, PB)

    in_block = Nb * Ct * HW * itemsize
    out_block = Nb * HW * itemsize
    pad_bytes = 2 * Nb * PADW * 4
    vmem_need = 2 * in_block + 2 * out_block + pad_bytes + (4 << 20)
    vmem_limit = int(min(max(vmem_need, 16 << 20), 64 << 20))

    cost = pl.CostEstimate(
        flops=int(2 * N * C * HW + 4 * N * HW * K * K),
        transcendentals=int(N * HW),
        bytes_accessed=int(N * C * HW * itemsize + N * HW * itemsize + 2 * K * K * 4),
    )

    out_flat = pl.pallas_call(
        kernel,
        out_shape=jax.ShapeDtypeStruct((N, 1, HW), x.dtype),
        grid=(N // Nb, C // Ct),
        in_specs=[
            pl.BlockSpec((Nb, Ct, HW), lambda n, c: (n, c, 0)),
            pl.BlockSpec(memory_space=pltpu.MemorySpace.SMEM),
        ],
        out_specs=pl.BlockSpec((Nb, 1, HW), lambda n, c: (n, 0, 0)),
        scratch_shapes=[pltpu.VMEM((2, Nb, PADW), jnp.float32)],
        compiler_params=pltpu.CompilerParams(
            dimension_semantics=("parallel", "arbitrary"),
            vmem_limit_bytes=vmem_limit),
        cost_estimate=cost,
    )(x_flat, w_flat)

    return out_flat.reshape(N, 1, H, W)


def _reference(x, weight):
    """Pure-JAX reference matching the PyTorch forward (cross-correlation)."""
    avg = jnp.mean(x, axis=1, keepdims=True)
    mx = jnp.max(x, axis=1, keepdims=True)
    cat = jnp.concatenate([avg, mx], axis=1)
    y = lax.conv_general_dilated(
        cat, weight, window_strides=(1, 1), padding="SAME",
        dimension_numbers=("NCHW", "OIHW", "NCHW"))
    return jax.nn.sigmoid(y)


if __name__ == "__main__":
    key = jax.random.PRNGKey(0)
    kx_key, kw_key = jax.random.split(key)

    N, C, H, W = 2, 4, 16, 16
    K = 7

    x = jax.random.normal(kx_key, (N, C, H, W), dtype=jnp.float32)
    # Deterministic conv weight, Kaiming-like scale (fan_in = 2 * K * K).
    weight = jax.random.normal(kw_key, (1, 2, K, K), dtype=jnp.float32)
    weight = weight * (1.0 / jnp.sqrt(2.0 * K * K))

    out = spatial_attention(x, weight, kernel_size=K)
    out = jax.block_until_ready(out)

    ref = _reference(x, weight)
    assert out.shape == (N, 1, H, W)
    assert jnp.allclose(out, ref, atol=1e-5, rtol=1e-4), "mismatch vs reference"

    print("KERNEL_OK")
</pallas_src>

<mosaic_0001>
module attributes {stable_mosaic.version = 11 : i64} {
  func.func @kernel(%arg0: i32, %arg1: i32, %arg2: memref<1x4x256xf32, #tpu.memory_space<vmem>>, %arg3: memref<98xf32, #tpu.memory_space<smem>>, %arg4: memref<1x1x256xf32, #tpu.memory_space<vmem>>, %arg5: memref<2x1x512xf32, #tpu.memory_space<vmem>>) attributes {dimension_semantics = [#tpu.dimension_semantics<parallel>, #tpu.dimension_semantics<arbitrary>], iteration_bounds = array<i64: 2, 1>, scalar_prefetch = 0 : i64, scratch_operands = 1 : i64, tpu.core_type = #tpu.core_type<tc>, window_params = [{transform_indices = @transform_0, window_bounds = array<i64: 1, 4, 256>}, {transform_indices = @transform_1, window_bounds = array<i64: 98>}, {transform_indices = @transform_2, window_bounds = array<i64: 1, 1, 256>}]} {
    %c0_i32 = arith.constant 0 : i32
    %0 = arith.cmpi eq, %arg1, %c0_i32 : i32
    %1 = arith.extui %0 : i1 to i32
    %c0_i32_0 = arith.constant 0 : i32
    %2 = arith.cmpi ne, %1, %c0_i32_0 : i32
    scf.if %2 {
      %cst_16 = arith.constant 0.000000e+00 : f32
      %21 = vector.broadcast %cst_16 : f32 to vector<2x1x512xf32>
      %c0_17 = arith.constant 0 : index
      %c0_18 = arith.constant 0 : index
      %c0_19 = arith.constant 0 : index
      %22 = vector.load %arg5[%c0_17, %c0_18, %c0_19] : memref<2x1x512xf32, #tpu.memory_space<vmem>>, vector<2x1x512xf32>
      tpu.vector_store %arg5[%c0_17, %c0_18, %c0_19], %21 {strides = array<i32>} : memref<2x1x512xf32, #tpu.memory_space<vmem>>, vector<2x1x512xf32>,
      %cst_20 = arith.constant 0xFF800000 : f32
      %23 = vector.broadcast %cst_20 : f32 to vector<1x256xf32>
      %c1_21 = arith.constant 1 : index
      %c0_22 = arith.constant 0 : index
      %c128_23 = arith.constant 128 : index
      %24 = vector.load %arg5[%c1_21, %c0_22, %c128_23] : memref<2x1x512xf32, #tpu.memory_space<vmem>>, vector<1x1x256xf32>
      %25 = vector.shape_cast %24 : vector<1x1x256xf32> to vector<1x256xf32>
      %26 = vector.shape_cast %23 : vector<1x256xf32> to vector<1x1x256xf32>
      tpu.vector_store %arg5[%c1_21, %c0_22, %c128_23], %26 {strides = array<i32>} : memref<2x1x512xf32, #tpu.memory_space<vmem>>, vector<1x1x256xf32>,
    } else {
    }
    %c0 = arith.constant 0 : index
    %c0_1 = arith.constant 0 : index
    %c0_2 = arith.constant 0 : index
    %3 = vector.load %arg2[%c0, %c0_1, %c0_2] : memref<1x4x256xf32, #tpu.memory_space<vmem>>, vector<1x4x256xf32>
    %cst = arith.constant dense<0.000000e+00> : vector<1x256xf32>
    %4 = vector.multi_reduction <add>, %3, %cst [1] : vector<1x4x256xf32> to vector<1x256xf32>
    %cst_3 = arith.constant dense<0xFF800000> : vector<1x256xf32>
    %5 = vector.multi_reduction <maximumf>, %3, %cst_3 [1] : vector<1x4x256xf32> to vector<1x256xf32>
    %c0_4 = arith.constant 0 : index
    %c0_5 = arith.constant 0 : index
    %c128 = arith.constant 128 : index
    %6 = vector.load %arg5[%c0_4, %c0_5, %c128] : memref<2x1x512xf32, #tpu.memory_space<vmem>>, vector<1x1x256xf32>
    %7 = vector.shape_cast %6 : vector<1x1x256xf32> to vector<1x256xf32>
    %8 = arith.addf %7, %4 : vector<1x256xf32>
    %c0_6 = arith.constant 0 : index
    %c0_7 = arith.constant 0 : index
    %c128_8 = arith.constant 128 : index
    %9 = vector.load %arg5[%c0_6, %c0_7, %c128_8] : memref<2x1x512xf32, #tpu.memory_space<vmem>>, vector<1x1x256xf32>
    %10 = vector.shape_cast %9 : vector<1x1x256xf32> to vector<1x256xf32>
    %11 = vector.shape_cast %8 : vector<1x256xf32> to vector<1x1x256xf32>
    tpu.vector_store %arg5[%c0_6, %c0_7, %c128_8], %11 {strides = array<i32>} : memref<2x1x512xf32, #tpu.memory_space<vmem>>, vector<1x1x256xf32>,
    %c1 = arith.constant 1 : index
    %c0_9 = arith.constant 0 : index
    %c128_10 = arith.constant 128 : index
    %12 = vector.load %arg5[%c1, %c0_9, %c128_10] : memref<2x1x512xf32, #tpu.memory_space<vmem>>, vector<1x1x256xf32>
    %13 = vector.shape_cast %12 : vector<1x1x256xf32> to vector<1x256xf32>
    %14 = arith.maximumf %13, %5 : vector<1x256xf32>
    %c1_11 = arith.constant 1 : index
    %c0_12 = arith.constant 0 : index
    %c128_13 = arith.constant 128 : index
    %15 = vector.load %arg5[%c1_11, %c0_12, %c128_13] : memref<2x1x512xf32, #tpu.memory_space<vmem>>, vector<1x1x256xf32>
    %16 = vector.shape_cast %15 : vector<1x1x256xf32> to vector<1x256xf32>
    %17 = vector.shape_cast %14 : vector<1x256xf32> to vector<1x1x256xf32>
    tpu.vector_store %arg5[%c1_11, %c0_12, %c128_13], %17 {strides = array<i32>} : memref<2x1x512xf32, #tpu.memory_space<vmem>>, vector<1x1x256xf32>,
    %c0_i32_14 = arith.constant 0 : i32
    %18 = arith.cmpi eq, %arg1, %c0_i32_14 : i32
    %19 = arith.extui %18 : i1 to i32
    %c0_i32_15 = arith.constant 0 : i32
    %20 = arith.cmpi ne, %19, %c0_i32_15 : i32
    scf.if %20 {
      %21 = tpu.iota {dimensions = array<i32: 1>} : vector<1x256xi32>
      %c16_i32 = arith.constant 16 : i32
      %c0_i32_16 = arith.constant 0 : i32
      %22 = arith.cmpi eq, %c16_i32, %c0_i32_16 : i32
      %c1_i32 = arith.constant 1 : i32
      %23 = arith.select %22, %c1_i32, %c16_i32 : i32
      %24 = vector.broadcast %23 : i32 to vector<1x256xi32>
      %25 = arith.remsi %21, %24 : vector<1x256xi32>
      %c0_i32_17 = arith.constant 0 : i32
      %26 = vector.broadcast %c0_i32_17 : i32 to vector<1x256xi32>
      %27 = arith.cmpi ne, %25, %26 : vector<1x256xi32>
      %c0_i32_18 = arith.constant 0 : i32
      %28 = vector.broadcast %c0_i32_18 : i32 to vector<1x256xi32>
      %29 = arith.cmpi slt, %25, %28 : vector<1x256xi32>
      %c0_i32_19 = arith.constant 0 : i32
      %30 = arith.cmpi slt, %23, %c0_i32_19 : i32
      %31 = vector.broadcast %30 : i1 to vector<1x256xi1>
      %32 = vector.broadcast %31 : vector<1x256xi1> to vector<1x256xi1>
      %33 = arith.xori %29, %32 : vector<1x256xi1>
      %34 = arith.andi %33, %27 : vector<1x256xi1>
      %35 = vector.broadcast %23 : i32 to vector<1x256xi32>
      %36 = arith.addi %25, %35 : vector<1x256xi32>
      %37 = arith.select %34, %36, %25 : vector<1x256xi1>, vector<1x256xi32>
      %cst_20 = arith.constant 0.000000e+00 : f32
      %38 = vector.broadcast %cst_20 : f32 to vector<1x256xf32>
      %c-3_i32 = arith.constant -3 : i32
      %39 = vector.broadcast %c-3_i32 : i32 to vector<1x256xi32>
      %40 = arith.addi %37, %39 : vector<1x256xi32>
      %c0_i32_21 = arith.constant 0 : i32
      %41 = vector.broadcast %c0_i32_21 : i32 to vector<1x256xi32>
      %42 = arith.cmpi sge, %40, %41 : vector<1x256xi32>
      %c-3_i32_22 = arith.constant -3 : i32
      %43 = vector.broadcast %c-3_i32_22 : i32 to vector<1x256xi32>
      %44 = arith.addi %37, %43 : vector<1x256xi32>
      %c16_i32_23 = arith.constant 16 : i32
      %45 = vector.broadcast %c16_i32_23 : i32 to vector<1x256xi32>
      %46 = arith.cmpi slt, %44, %45 : vector<1x256xi32>
      %47 = arith.andi %42, %46 : vector<1x256xi1>
      %cst_24 = arith.constant 0.000000e+00 : f32
      %48 = vector.broadcast %cst_24 : f32 to vector<1x256xf32>
      %c0_25 = arith.constant 0 : index
      %c0_26 = arith.constant 0 : index
      %c77 = arith.constant 77 : index
      %49 = vector.load %arg5[%c0_25, %c0_26, %c77] : memref<2x1x512xf32, #tpu.memory_space<vmem>>, vector<1x1x352xf32>
      %50 = vector.shape_cast %49 : vector<1x1x352xf32> to vector<1x352xf32>
      %c0_27 = arith.constant 0 : index
      %51 = memref.load %arg3[%c0_27] : memref<98xf32, #tpu.memory_space<smem>>
      %52 = vector.extract_strided_slice %50 {offsets = [0, 0], sizes = [1, 256], strides = [1, 1]} : vector<1x352xf32> to vector<1x256xf32>
      %53 = vector.broadcast %51 : f32 to vector<1x256xf32>
      %54 = arith.mulf %53, %52 : vector<1x256xf32>
      %55 = arith.addf %48, %54 : vector<1x256xf32>
      %c7 = arith.constant 7 : index
      %56 = memref.load %arg3[%c7] : memref<98xf32, #tpu.memory_space<smem>>
      %57 = vector.extract_strided_slice %50 {offsets = [0, 16], sizes = [1, 256], strides = [1, 1]} : vector<1x352xf32> to vector<1x256xf32>
      %58 = vector.broadcast %56 : f32 to vector<1x256xf32>
      %59 = arith.mulf %58, %57 : vector<1x256xf32>
      %60 = arith.addf %55, %59 : vector<1x256xf32>
      %c14 = arith.constant 14 : index
      %61 = memref.load %arg3[%c14] : memref<98xf32, #tpu.memory_space<smem>>
      %62 = vector.extract_strided_slice %50 {offsets = [0, 32], sizes = [1, 256], strides = [1, 1]} : vector<1x352xf32> to vector<1x256xf32>
      %63 = vector.broadcast %61 : f32 to vector<1x256xf32>
      %64 = arith.mulf %63, %62 : vector<1x256xf32>
      %65 = arith.addf %60, %64 : vector<1x256xf32>
      %c21 = arith.constant 21 : index
      %66 = memref.load %arg3[%c21] : memref<98xf32, #tpu.memory_space<smem>>
      %67 = vector.extract_strided_slice %50 {offsets = [0, 48], sizes = [1, 256], strides = [1, 1]} : vector<1x352xf32> to vector<1x256xf32>
      %68 = vector.broadcast %66 : f32 to vector<1x256xf32>
      %69 = arith.mulf %68, %67 : vector<1x256xf32>
      %70 = arith.addf %65, %69 : vector<1x256xf32>
      %c28 = arith.constant 28 : index
      %71 = memref.load %arg3[%c28] : memref<98xf32, #tpu.memory_space<smem>>
      %72 = vector.extract_strided_slice %50 {offsets = [0, 64], sizes = [1, 256], strides = [1, 1]} : vector<1x352xf32> to vector<1x256xf32>
      %73 = vector.broadcast %71 : f32 to vector<1x256xf32>
      %74 = arith.mulf %73, %72 : vector<1x256xf32>
      %75 = arith.addf %70, %74 : vector<1x256xf32>
      %c35 = arith.constant 35 : index
      %76 = memref.load %arg3[%c35] : memref<98xf32, #tpu.memory_space<smem>>
      %77 = vector.extract_strided_slice %50 {offsets = [0, 80], sizes = [1, 256], strides = [1, 1]} : vector<1x352xf32> to vector<1x256xf32>
      %78 = vector.broadcast %76 : f32 to vector<1x256xf32>
      %79 = arith.mulf %78, %77 : vector<1x256xf32>
      %80 = arith.addf %75, %79 : vector<1x256xf32>
      %c42 = arith.constant 42 : index
      %81 = memref.load %arg3[%c42] : memref<98xf32, #tpu.memory_space<smem>>
      %82 = vector.extract_strided_slice %50 {offsets = [0, 96], sizes = [1, 256], strides = [1, 1]} : vector<1x352xf32> to vector<1x256xf32>
      %83 = vector.broadcast %81 : f32 to vector<1x256xf32>
      %84 = arith.mulf %83, %82 : vector<1x256xf32>
      %85 = arith.addf %80, %84 : vector<1x256xf32>
      %c1_28 = arith.constant 1 : index
      %c0_29 = arith.constant 0 : index
      %c77_30 = arith.constant 77 : index
      %86 = vector.load %arg5[%c1_28, %c0_29, %c77_30] : memref<2x1x512xf32, #tpu.memory_space<vmem>>, vector<1x1x352xf32>
      %87 = vector.shape_cast %86 : vector<1x1x352xf32> to vector<1x352xf32>
      %c49 = arith.constant 49 : index
      %88 = memref.load %arg3[%c49] : memref<98xf32, #tpu.memory_space<smem>>
      %89 = vector.extract_strided_slice %87 {offsets = [0, 0], sizes = [1, 256], strides = [1, 1]} : vector<1x352xf32> to vector<1x256xf32>
      %90 = vector.broadcast %88 : f32 to vector<1x256xf32>
      %91 = arith.mulf %90, %89 : vector<1x256xf32>
      %92 = arith.addf %85, %91 : vector<1x256xf32>
      %c56 = arith.constant 56 : index
      %93 = memref.load %arg3[%c56] : memref<98xf32, #tpu.memory_space<smem>>
      %94 = vector.extract_strided_slice %87 {offsets = [0, 16], sizes = [1, 256], strides = [1, 1]} : vector<1x352xf32> to vector<1x256xf32>
      %95 = vector.broadcast %93 : f32 to vector<1x256xf32>
      %96 = arith.mulf %95, %94 : vector<1x256xf32>
      %97 = arith.addf %92, %96 : vector<1x256xf32>
      %c63 = arith.constant 63 : index
      %98 = memref.load %arg3[%c63] : memref<98xf32, #tpu.memory_space<smem>>
      %99 = vector.extract_strided_slice %87 {offsets = [0, 32], sizes = [1, 256], strides = [1, 1]} : vector<1x352xf32> to vector<1x256xf32>
      %100 = vector.broadcast %98 : f32 to vector<1x256xf32>
      %101 = arith.mulf %100, %99 : vector<1x256xf32>
      %102 = arith.addf %97, %101 : vector<1x256xf32>
      %c70 = arith.constant 70 : index
      %103 = memref.load %arg3[%c70] : memref<98xf32, #tpu.memory_space<smem>>
      %104 = vector.extract_strided_slice %87 {offsets = [0, 48], sizes = [1, 256], strides = [1, 1]} : vector<1x352xf32> to vector<1x256xf32>
      %105 = vector.broadcast %103 : f32 to vector<1x256xf32>
      %106 = arith.mulf %105, %104 : vector<1x256xf32>
      %107 = arith.addf %102, %106 : vector<1x256xf32>
      %c77_31 = arith.constant 77 : index
      %108 = memref.load %arg3[%c77_31] : memref<98xf32, #tpu.memory_space<smem>>
      %109 = vector.extract_strided_slice %87 {offsets = [0, 64], sizes = [1, 256], strides = [1, 1]} : vector<1x352xf32> to vector<1x256xf32>
      %110 = vector.broadcast %108 : f32 to vector<1x256xf32>
      %111 = arith.mulf %110, %109 : vector<1x256xf32>
      %112 = arith.addf %107, %111 : vector<1x256xf32>
      %c84 = arith.constant 84 : index
      %113 = memref.load %arg3[%c84] : memref<98xf32, #tpu.memory_space<smem>>
      %114 = vector.extract_strided_slice %87 {offsets = [0, 80], sizes = [1, 256], strides = [1, 1]} : vector<1x352xf32> to vector<1x256xf32>
      %115 = vector.broadcast %113 : f32 to vector<1x256xf32>
      %116 = arith.mulf %115, %114 : vector<1x256xf32>
      %117 = arith.addf %112, %116 : vector<1x256xf32>
      %c91 = arith.constant 91 : index
      %118 = memref.load %arg3[%c91] : memref<98xf32, #tpu.memory_space<smem>>
      %119 = vector.extract_strided_slice %87 {offsets = [0, 96], sizes = [1, 256], strides = [1, 1]} : vector<1x352xf32> to vector<1x256xf32>
      %120 = vector.broadcast %118 : f32 to vector<1x256xf32>
      %121 = arith.mulf %120, %119 : vector<1x256xf32>
      %122 = arith.addf %117, %121 : vector<1x256xf32>
      %cst_32 = arith.constant 0.000000e+00 : f32
      %123 = vector.broadcast %cst_32 : f32 to vector<1x256xf32>
      %124 = arith.select %47, %122, %123 : vector<1x256xi1>, vector<1x256xf32>
      %125 = arith.addf %38, %124 : vector<1x256xf32>
      %c-2_i32 = arith.constant -2 : i32
      %126 = vector.broadcast %c-2_i32 : i32 to vector<1x256xi32>
      %127 = arith.addi %37, %126 : vector<1x256xi32>
      %c0_i32_33 = arith.constant 0 : i32
      %128 = vector.broadcast %c0_i32_33 : i32 to vector<1x256xi32>
      %129 = arith.cmpi sge, %127, %128 : vector<1x256xi32>
      %c-2_i32_34 = arith.constant -2 : i32
      %130 = vector.broadcast %c-2_i32_34 : i32 to vector<1x256xi32>
      %131 = arith.addi %37, %130 : vector<1x256xi32>
      %c16_i32_35 = arith.constant 16 : i32
      %132 = vector.broadcast %c16_i32_35 : i32 to vector<1x256xi32>
      %133 = arith.cmpi slt, %131, %132 : vector<1x256xi32>
      %134 = arith.andi %129, %133 : vector<1x256xi1>
      %cst_36 = arith.constant 0.000000e+00 : f32
      %135 = vector.broadcast %cst_36 : f32 to vector<1x256xf32>
      %c0_37 = arith.constant 0 : index
      %c0_38 = arith.constant 0 : index
      %c78 = arith.constant 78 : index
      %136 = vector.load %arg5[%c0_37, %c0_38, %c78] : memref<2x1x512xf32, #tpu.memory_space<vmem>>, vector<1x1x352xf32>
      %137 = vector.shape_cast %136 : vector<1x1x352xf32> to vector<1x352xf32>
      %c1_39 = arith.constant 1 : index
      %138 = memref.load %arg3[%c1_39] : memref<98xf32, #tpu.memory_space<smem>>
      %139 = vector.extract_strided_slice %137 {offsets = [0, 0], sizes = [1, 256], strides = [1, 1]} : vector<1x352xf32> to vector<1x256xf32>
      %140 = vector.broadcast %138 : f32 to vector<1x256xf32>
      %141 = arith.mulf %140, %139 : vector<1x256xf32>
      %142 = arith.addf %135, %141 : vector<1x256xf32>
      %c8 = arith.constant 8 : index
      %143 = memref.load %arg3[%c8] : memref<98xf32, #tpu.memory_space<smem>>
      %144 = vector.extract_strided_slice %137 {offsets = [0, 16], sizes = [1, 256], strides = [1, 1]} : vector<1x352xf32> to vector<1x256xf32>
      %145 = vector.broadcast %143 : f32 to vector<1x256xf32>
      %146 = arith.mulf %145, %144 : vector<1x256xf32>
      %147 = arith.addf %142, %146 : vector<1x256xf32>
      %c15 = arith.constant 15 : index
      %148 = memref.load %arg3[%c15] : memref<98xf32, #tpu.memory_space<smem>>
      %149 = vector.extract_strided_slice %137 {offsets = [0, 32], sizes = [1, 256], strides = [1, 1]} : vector<1x352xf32> to vector<1x256xf32>
      %150 = vector.broadcast %148 : f32 to vector<1x256xf32>
      %151 = arith.mulf %150, %149 : vector<1x256xf32>
      %152 = arith.addf %147, %151 : vector<1x256xf32>
      %c22 = arith.constant 22 : index
      %153 = memref.load %arg3[%c22] : memref<98xf32, #tpu.memory_space<smem>>
      %154 = vector.extract_strided_slice %137 {offsets = [0, 48], sizes = [1, 256], strides = [1, 1]} : vector<1x352xf32> to vector<1x256xf32>
      %155 = vector.broadcast %153 : f32 to vector<1x256xf32>
      %156 = arith.mulf %155, %154 : vector<1x256xf32>
      %157 = arith.addf %152, %156 : vector<1x256xf32>
      %c29 = arith.constant 29 : index
      %158 = memref.load %arg3[%c29] : memref<98xf32, #tpu.memory_space<smem>>
      %159 = vector.extract_strided_slice %137 {offsets = [0, 64], sizes = [1, 256], strides = [1, 1]} : vector<1x352xf32> to vector<1x256xf32>
      %160 = vector.broadcast %158 : f32 to vector<1x256xf32>
      %161 = arith.mulf %160, %159 : vector<1x256xf32>
      %162 = arith.addf %157, %161 : vector<1x256xf32>
      %c36 = arith.constant 36 : index
      %163 = memref.load %arg3[%c36] : memref<98xf32, #tpu.memory_space<smem>>
      %164 = vector.extract_strided_slice %137 {offsets = [0, 80], sizes = [1, 256], strides = [1, 1]} : vector<1x352xf32> to vector<1x256xf32>
      %165 = vector.broadcast %163 : f32 to vector<1x256xf32>
      %166 = arith.mulf %165, %164 : vector<1x256xf32>
      %167 = arith.addf %162, %166 : vector<1x256xf32>
      %c43 = arith.constant 43 : index
      %168 = memref.load %arg3[%c43] : memref<98xf32, #tpu.memory_space<smem>>
      %169 = vector.extract_strided_slice %137 {offsets = [0, 96], sizes = [1, 256], strides = [1, 1]} : vector<1x352xf32> to vector<1x256xf32>
      %170 = vector.broadcast %168 : f32 to vector<1x256xf32>
      %171 = arith.mulf %170, %169 : vector<1x256xf32>
      %172 = arith.addf %167, %171 : vector<1x256xf32>
      %c1_40 = arith.constant 1 : index
      %c0_41 = arith.constant 0 : index
      %c78_42 = arith.constant 78 : index
      %173 = vector.load %arg5[%c1_40, %c0_41, %c78_42] : memref<2x1x512xf32, #tpu.memory_space<vmem>>, vector<1x1x352xf32>
      %174 = vector.shape_cast %173 : vector<1x1x352xf32> to vector<1x352xf32>
      %c50 = arith.constant 50 : index
      %175 = memref.load %arg3[%c50] : memref<98xf32, #tpu.memory_space<smem>>
      %176 = vector.extract_strided_slice %174 {offsets = [0, 0], sizes = [1, 256], strides = [1, 1]} : vector<1x352xf32> to vector<1x256xf32>
      %177 = vector.broadcast %175 : f32 to vector<1x256xf32>
      %178 = arith.mulf %177, %176 : vector<1x256xf32>
      %179 = arith.addf %172, %178 : vector<1x256xf32>
      %c57 = arith.constant 57 : index
      %180 = memref.load %arg3[%c57] : memref<98xf32, #tpu.memory_space<smem>>
      %181 = vector.extract_strided_slice %174 {offsets = [0, 16], sizes = [1, 256], strides = [1, 1]} : vector<1x352xf32> to vector<1x256xf32>
      %182 = vector.broadcast %180 : f32 to vector<1x256xf32>
      %183 = arith.mulf %182, %181 : vector<1x256xf32>
      %184 = arith.addf %179, %183 : vector<1x256xf32>
      %c64 = arith.constant 64 : index
      %185 = memref.load %arg3[%c64] : memref<98xf32, #tpu.memory_space<smem>>
      %186 = vector.extract_strided_slice %174 {offsets = [0, 32], sizes = [1, 256], strides = [1, 1]} : vector<1x352xf32> to vector<1x256xf32>
      %187 = vector.broadcast %185 : f32 to vector<1x256xf32>
      %188 = arith.mulf %187, %186 : vector<1x256xf32>
      %189 = arith.addf %184, %188 : vector<1x256xf32>
      %c71 = arith.constant 71 : index
      %190 = memref.load %arg3[%c71] : memref<98xf32, #tpu.memory_space<smem>>
      %191 = vector.extract_strided_slice %174 {offsets = [0, 48], sizes = [1, 256], strides = [1, 1]} : vector<1x352xf32> to vector<1x256xf32>
      %192 = vector.broadcast %190 : f32 to vector<1x256xf32>
      %193 = arith.mulf %192, %191 : vector<1x256xf32>
      %194 = arith.addf %189, %193 : vector<1x256xf32>
      %c78_43 = arith.constant 78 : index
      %195 = memref.load %arg3[%c78_43] : memref<98xf32, #tpu.memory_space<smem>>
      %196 = vector.extract_strided_slice %174 {offsets = [0, 64], sizes = [1, 256], strides = [1, 1]} : vector<1x352xf32> to vector<1x256xf32>
      %197 = vector.broadcast %195 : f32 to vector<1x256xf32>
      %198 = arith.mulf %197, %196 : vector<1x256xf32>
      %199 = arith.addf %194, %198 : vector<1x256xf32>
      %c85 = arith.constant 85 : index
      %200 = memref.load %arg3[%c85] : memref<98xf32, #tpu.memory_space<smem>>
      %201 = vector.extract_strided_slice %174 {offsets = [0, 80], sizes = [1, 256], strides = [1, 1]} : vector<1x352xf32> to vector<1x256xf32>
      %202 = vector.broadcast %200 : f32 to vector<1x256xf32>
      %203 = arith.mulf %202, %201 : vector<1x256xf32>
      %204 = arith.addf %199, %203 : vector<1x256xf32>
      %c92 = arith.constant 92 : index
      %205 = memref.load %arg3[%c92] : memref<98xf32, #tpu.memory_space<smem>>
      %206 = vector.extract_strided_slice %174 {offsets = [0, 96], sizes = [1, 256], strides = [1, 1]} : vector<1x352xf32> to vector<1x256xf32>
      %207 = vector.broadcast %205 : f32 to vector<1x256xf32>
      %208 = arith.mulf %207, %206 : vector<1x256xf32>
      %209 = arith.addf %204, %208 : vector<1x256xf32>
      %cst_44 = arith.constant 0.000000e+00 : f32
      %210 = vector.broadcast %cst_44 : f32 to vector<1x256xf32>
      %211 = arith.select %134, %209, %210 : vector<1x256xi1>, vector<1x256xf32>
      %212 = arith.addf %125, %211 : vector<1x256xf32>
      %c-1_i32 = arith.constant -1 : i32
      %213 = vector.broadcast %c-1_i32 : i32 to vector<1x256xi32>
      %214 = arith.addi %37, %213 : vector<1x256xi32>
      %c0_i32_45 = arith.constant 0 : i32
      %215 = vector.broadcast %c0_i32_45 : i32 to vector<1x256xi32>
      %216 = arith.cmpi sge, %214, %215 : vector<1x256xi32>
      %c-1_i32_46 = arith.constant -1 : i32
      %217 = vector.broadcast %c-1_i32_46 : i32 to vector<1x256xi32>
      %218 = arith.addi %37, %217 : vector<1x256xi32>
      %c16_i32_47 = arith.constant 16 : i32
      %219 = vector.broadcast %c16_i32_47 : i32 to vector<1x256xi32>
      %220 = arith.cmpi slt, %218, %219 : vector<1x256xi32>
      %221 = arith.andi %216, %220 : vector<1x256xi1>
      %cst_48 = arith.constant 0.000000e+00 : f32
      %222 = vector.broadcast %cst_48 : f32 to vector<1x256xf32>
      %c0_49 = arith.constant 0 : index
      %c0_50 = arith.constant 0 : index
      %c79 = arith.constant 79 : index
      %223 = vector.load %arg5[%c0_49, %c0_50, %c79] : memref<2x1x512xf32, #tpu.memory_space<vmem>>, vector<1x1x352xf32>
      %224 = vector.shape_cast %223 : vector<1x1x352xf32> to vector<1x352xf32>
      %c2 = arith.constant 2 : index
      %225 = memref.load %arg3[%c2] : memref<98xf32, #tpu.memory_space<smem>>
      %226 = vector.extract_strided_slice %224 {offsets = [0, 0], sizes = [1, 256], strides = [1, 1]} : vector<1x352xf32> to vector<1x256xf32>
      %227 = vector.broadcast %225 : f32 to vector<1x256xf32>
      %228 = arith.mulf %227, %226 : vector<1x256xf32>
      %229 = arith.addf %222, %228 : vector<1x256xf32>
      %c9 = arith.constant 9 : index
      %230 = memref.load %arg3[%c9] : memref<98xf32, #tpu.memory_space<smem>>
      %231 = vector.extract_strided_slice %224 {offsets = [0, 16], sizes = [1, 256], strides = [1, 1]} : vector<1x352xf32> to vector<1x256xf32>
      %232 = vector.broadcast %230 : f32 to vector<1x256xf32>
      %233 = arith.mulf %232, %231 : vector<1x256xf32>
      %234 = arith.addf %229, %233 : vector<1x256xf32>
      %c16 = arith.constant 16 : index
      %235 = memref.load %arg3[%c16] : memref<98xf32, #tpu.memory_space<smem>>
      %236 = vector.extract_strided_slice %224 {offsets = [0, 32], sizes = [1, 256], strides = [1, 1]} : vector<1x352xf32> to vector<1x256xf32>
      %237 = vector.broadcast %235 : f32 to vector<1x256xf32>
      %238 = arith.mulf %237, %236 : vector<1x256xf32>
      %239 = arith.addf %234, %238 : vector<1x256xf32>
      %c23 = arith.constant 23 : index
      %240 = memref.load %arg3[%c23] : memref<98xf32, #tpu.memory_space<smem>>
      %241 = vector.extract_strided_slice %224 {offsets = [0, 48], sizes = [1, 256], strides = [1, 1]} : vector<1x352xf32> to vector<1x256xf32>
      %242 = vector.broadcast %240 : f32 to vector<1x256xf32>
      %243 = arith.mulf %242, %241 : vector<1x256xf32>
      %244 = arith.addf %239, %243 : vector<1x256xf32>
      %c30 = arith.constant 30 : index
      %245 = memref.load %arg3[%c30] : memref<98xf32, #tpu.memory_space<smem>>
      %246 = vector.extract_strided_slice %224 {offsets = [0, 64], sizes = [1, 256], strides = [1, 1]} : vector<1x352xf32> to vector<1x256xf32>
      %247 = vector.broadcast %245 : f32 to vector<1x256xf32>
      %248 = arith.mulf %247, %246 : vector<1x256xf32>
      %249 = arith.addf %244, %248 : vector<1x256xf32>
      %c37 = arith.constant 37 : index
      %250 = memref.load %arg3[%c37] : memref<98xf32, #tpu.memory_space<smem>>
      %251 = vector.extract_strided_slice %224 {offsets = [0, 80], sizes = [1, 256], strides = [1, 1]} : vector<1x352xf32> to vector<1x256xf32>
      %252 = vector.broadcast %250 : f32 to vector<1x256xf32>
      %253 = arith.mulf %252, %251 : vector<1x256xf32>
      %254 = arith.addf %249, %253 : vector<1x256xf32>
      %c44 = arith.constant 44 : index
      %255 = memref.load %arg3[%c44] : memref<98xf32, #tpu.memory_space<smem>>
      %256 = vector.extract_strided_slice %224 {offsets = [0, 96], sizes = [1, 256], strides = [1, 1]} : vector<1x352xf32> to vector<1x256xf32>
      %257 = vector.broadcast %255 : f32 to vector<1x256xf32>
      %258 = arith.mulf %257, %256 : vector<1x256xf32>
      %259 = arith.addf %254, %258 : vector<1x256xf32>
      %c1_51 = arith.constant 1 : index
      %c0_52 = arith.constant 0 : index
      %c79_53 = arith.constant 79 : index
      %260 = vector.load %arg5[%c1_51, %c0_52, %c79_53] : memref<2x1x512xf32, #tpu.memory_space<vmem>>, vector<1x1x352xf32>
      %261 = vector.shape_cast %260 : vector<1x1x352xf32> to vector<1x352xf32>
      %c51 = arith.constant 51 : index
      %262 = memref.load %arg3[%c51] : memref<98xf32, #tpu.memory_space<smem>>
      %263 = vector.extract_strided_slice %261 {offsets = [0, 0], sizes = [1, 256], strides = [1, 1]} : vector<1x352xf32> to vector<1x256xf32>
      %264 = vector.broadcast %262 : f32 to vector<1x256xf32>
      %265 = arith.mulf %264, %263 : vector<1x256xf32>
      %266 = arith.addf %259, %265 : vector<1x256xf32>
      %c58 = arith.constant 58 : index
      %267 = memref.load %arg3[%c58] : memref<98xf32, #tpu.memory_space<smem>>
      %268 = vector.extract_strided_slice %261 {offsets = [0, 16], sizes = [1, 256], strides = [1, 1]} : vector<1x352xf32> to vector<1x256xf32>
      %269 = vector.broadcast %267 : f32 to vector<1x256xf32>
      %270 = arith.mulf %269, %268 : vector<1x256xf32>
      %271 = arith.addf %266, %270 : vector<1x256xf32>
      %c65 = arith.constant 65 : index
      %272 = memref.load %arg3[%c65] : memref<98xf32, #tpu.memory_space<smem>>
      %273 = vector.extract_strided_slice %261 {offsets = [0, 32], sizes = [1, 256], strides = [1, 1]} : vector<1x352xf32> to vector<1x256xf32>
      %274 = vector.broadcast %272 : f32 to vector<1x256xf32>
      %275 = arith.mulf %274, %273 : vector<1x256xf32>
      %276 = arith.addf %271, %275 : vector<1x256xf32>
      %c72 = arith.constant 72 : index
      %277 = memref.load %arg3[%c72] : memref<98xf32, #tpu.memory_space<smem>>
      %278 = vector.extract_strided_slice %261 {offsets = [0, 48], sizes = [1, 256], strides = [1, 1]} : vector<1x352xf32> to vector<1x256xf32>
      %279 = vector.broadcast %277 : f32 to vector<1x256xf32>
      %280 = arith.mulf %279, %278 : vector<1x256xf32>
      %281 = arith.addf %276, %280 : vector<1x256xf32>
      %c79_54 = arith.constant 79 : index
      %282 = memref.load %arg3[%c79_54] : memref<98xf32, #tpu.memory_space<smem>>
      %283 = vector.extract_strided_slice %261 {offsets = [0, 64], sizes = [1, 256], strides = [1, 1]} : vector<1x352xf32> to vector<1x256xf32>
      %284 = vector.broadcast %282 : f32 to vector<1x256xf32>
      %285 = arith.mulf %284, %283 : vector<1x256xf32>
      %286 = arith.addf %281, %285 : vector<1x256xf32>
      %c86 = arith.constant 86 : index
      %287 = memref.load %arg3[%c86] : memref<98xf32, #tpu.memory_space<smem>>
      %288 = vector.extract_strided_slice %261 {offsets = [0, 80], sizes = [1, 256], strides = [1, 1]} : vector<1x352xf32> to vector<1x256xf32>
      %289 = vector.broadcast %287 : f32 to vector<1x256xf32>
      %290 = arith.mulf %289, %288 : vector<1x256xf32>
      %291 = arith.addf %286, %290 : vector<1x256xf32>
      %c93 = arith.constant 93 : index
      %292 = memref.load %arg3[%c93] : memref<98xf32, #tpu.memory_space<smem>>
      %293 = vector.extract_strided_slice %261 {offsets = [0, 96], sizes = [1, 256], strides = [1, 1]} : vector<1x352xf32> to vector<1x256xf32>
      %294 = vector.broadcast %292 : f32 to vector<1x256xf32>
      %295 = arith.mulf %294, %293 : vector<1x256xf32>
      %296 = arith.addf %291, %295 : vector<1x256xf32>
      %cst_55 = arith.constant 0.000000e+00 : f32
      %297 = vector.broadcast %cst_55 : f32 to vector<1x256xf32>
      %298 = arith.select %221, %296, %297 : vector<1x256xi1>, vector<1x256xf32>
      %299 = arith.addf %212, %298 : vector<1x256xf32>
      %c0_i32_56 = arith.constant 0 : i32
      %300 = vector.broadcast %c0_i32_56 : i32 to vector<1x256xi32>
      %301 = arith.addi %37, %300 : vector<1x256xi32>
      %c0_i32_57 = arith.constant 0 : i32
      %302 = vector.broadcast %c0_i32_57 : i32 to vector<1x256xi32>
      %303 = arith.cmpi sge, %301, %302 : vector<1x256xi32>
      %c0_i32_58 = arith.constant 0 : i32
      %304 = vector.broadcast %c0_i32_58 : i32 to vector<1x256xi32>
      %305 = arith.addi %37, %304 : vector<1x256xi32>
      %c16_i32_59 = arith.constant 16 : i32
      %306 = vector.broadcast %c16_i32_59 : i32 to vector<1x256xi32>
      %307 = arith.cmpi slt, %305, %306 : vector<1x256xi32>
      %308 = arith.andi %303, %307 : vector<1x256xi1>
      %cst_60 = arith.constant 0.000000e+00 : f32
      %309 = vector.broadcast %cst_60 : f32 to vector<1x256xf32>
      %c0_61 = arith.constant 0 : index
      %c0_62 = arith.constant 0 : index
      %c80 = arith.constant 80 : index
      %310 = vector.load %arg5[%c0_61, %c0_62, %c80] : memref<2x1x512xf32, #tpu.memory_space<vmem>>, vector<1x1x352xf32>
      %311 = vector.shape_cast %310 : vector<1x1x352xf32> to vector<1x352xf32>
      %c3 = arith.constant 3 : index
      %312 = memref.load %arg3[%c3] : memref<98xf32, #tpu.memory_space<smem>>
      %313 = vector.extract_strided_slice %311 {offsets = [0, 0], sizes = [1, 256], strides = [1, 1]} : vector<1x352xf32> to vector<1x256xf32>
      %314 = vector.broadcast %312 : f32 to vector<1x256xf32>
      %315 = arith.mulf %314, %313 : vector<1x256xf32>
      %316 = arith.addf %309, %315 : vector<1x256xf32>
      %c10 = arith.constant 10 : index
      %317 = memref.load %arg3[%c10] : memref<98xf32, #tpu.memory_space<smem>>
      %318 = vector.extract_strided_slice %311 {offsets = [0, 16], sizes = [1, 256], strides = [1, 1]} : vector<1x352xf32> to vector<1x256xf32>
      %319 = vector.broadcast %317 : f32 to vector<1x256xf32>
      %320 = arith.mulf %319, %318 : vector<1x256xf32>
      %321 = arith.addf %316, %320 : vector<1x256xf32>
      %c17 = arith.constant 17 : index
      %322 = memref.load %arg3[%c17] : memref<98xf32, #tpu.memory_space<smem>>
      %323 = vector.extract_strided_slice %311 {offsets = [0, 32], sizes = [1, 256], strides = [1, 1]} : vector<1x352xf32> to vector<1x256xf32>
      %324 = vector.broadcast %322 : f32 to vector<1x256xf32>
      %325 = arith.mulf %324, %323 : vector<1x256xf32>
      %326 = arith.addf %321, %325 : vector<1x256xf32>
      %c24 = arith.constant 24 : index
      %327 = memref.load %arg3[%c24] : memref<98xf32, #tpu.memory_space<smem>>
      %328 = vector.extract_strided_slice %311 {offsets = [0, 48], sizes = [1, 256], strides = [1, 1]} : vector<1x352xf32> to vector<1x256xf32>
      %329 = vector.broadcast %327 : f32 to vector<1x256xf32>
      %330 = arith.mulf %329, %328 : vector<1x256xf32>
      %331 = arith.addf %326, %330 : vector<1x256xf32>
      %c31 = arith.constant 31 : index
      %332 = memref.load %arg3[%c31] : memref<98xf32, #tpu.memory_space<smem>>
      %333 = vector.extract_strided_slice %311 {offsets = [0, 64], sizes = [1, 256], strides = [1, 1]} : vector<1x352xf32> to vector<1x256xf32>
      %334 = vector.broadcast %332 : f32 to vector<1x256xf32>
      %335 = arith.mulf %334, %333 : vector<1x256xf32>
      %336 = arith.addf %331, %335 : vector<1x256xf32>
      %c38 = arith.constant 38 : index
      %337 = memref.load %arg3[%c38] : memref<98xf32, #tpu.memory_space<smem>>
      %338 = vector.extract_strided_slice %311 {offsets = [0, 80], sizes = [1, 256], strides = [1, 1]} : vector<1x352xf32> to vector<1x256xf32>
      %339 = vector.broadcast %337 : f32 to vector<1x256xf32>
      %340 = arith.mulf %339, %338 : vector<1x256xf32>
      %341 = arith.addf %336, %340 : vector<1x256xf32>
      %c45 = arith.constant 45 : index
      %342 = memref.load %arg3[%c45] : memref<98xf32, #tpu.memory_space<smem>>
      %343 = vector.extract_strided_slice %311 {offsets = [0, 96], sizes = [1, 256], strides = [1, 1]} : vector<1x352xf32> to vector<1x256xf32>
      %344 = vector.broadcast %342 : f32 to vector<1x256xf32>
      %345 = arith.mulf %344, %343 : vector<1x256xf32>
      %346 = arith.addf %341, %345 : vector<1x256xf32>
      %c1_63 = arith.constant 1 : index
      %c0_64 = arith.constant 0 : index
      %c80_65 = arith.constant 80 : index
      %347 = vector.load %arg5[%c1_63, %c0_64, %c80_65] : memref<2x1x512xf32, #tpu.memory_space<vmem>>, vector<1x1x352xf32>
      %348 = vector.shape_cast %347 : vector<1x1x352xf32> to vector<1x352xf32>
      %c52 = arith.constant 52 : index
      %349 = memref.load %arg3[%c52] : memref<98xf32, #tpu.memory_space<smem>>
      %350 = vector.extract_strided_slice %348 {offsets = [0, 0], sizes = [1, 256], strides = [1, 1]} : vector<1x352xf32> to vector<1x256xf32>
      %351 = vector.broadcast %349 : f32 to vector<1x256xf32>
      %352 = arith.mulf %351, %350 : vector<1x256xf32>
      %353 = arith.addf %346, %352 : vector<1x256xf32>
      %c59 = arith.constant 59 : index
      %354 = memref.load %arg3[%c59] : memref<98xf32, #tpu.memory_space<smem>>
      %355 = vector.extract_strided_slice %348 {offsets = [0, 16], sizes = [1, 256], strides = [1, 1]} : vector<1x352xf32> to vector<1x256xf32>
      %356 = vector.broadcast %354 : f32 to vector<1x256xf32>
      %357 = arith.mulf %356, %355 : vector<1x256xf32>
      %358 = arith.addf %353, %357 : vector<1x256xf32>
      %c66 = arith.constant 66 : index
      %359 = memref.load %arg3[%c66] : memref<98xf32, #tpu.memory_space<smem>>
      %360 = vector.extract_strided_slice %348 {offsets = [0, 32], sizes = [1, 256], strides = [1, 1]} : vector<1x352xf32> to vector<1x256xf32>
      %361 = vector.broadcast %359 : f32 to vector<1x256xf32>
      %362 = arith.mulf %361, %360 : vector<1x256xf32>
      %363 = arith.addf %358, %362 : vector<1x256xf32>
      %c73 = arith.constant 73 : index
      %364 = memref.load %arg3[%c73] : memref<98xf32, #tpu.memory_space<smem>>
      %365 = vector.extract_strided_slice %348 {offsets = [0, 48], sizes = [1, 256], strides = [1, 1]} : vector<1x352xf32> to vector<1x256xf32>
      %366 = vector.broadcast %364 : f32 to vector<1x256xf32>
      %367 = arith.mulf %366, %365 : vector<1x256xf32>
      %368 = arith.addf %363, %367 : vector<1x256xf32>
      %c80_66 = arith.constant 80 : index
      %369 = memref.load %arg3[%c80_66] : memref<98xf32, #tpu.memory_space<smem>>
      %370 = vector.extract_strided_slice %348 {offsets = [0, 64], sizes = [1, 256], strides = [1, 1]} : vector<1x352xf32> to vector<1x256xf32>
      %371 = vector.broadcast %369 : f32 to vector<1x256xf32>
      %372 = arith.mulf %371, %370 : vector<1x256xf32>
      %373 = arith.addf %368, %372 : vector<1x256xf32>
      %c87 = arith.constant 87 : index
      %374 = memref.load %arg3[%c87] : memref<98xf32, #tpu.memory_space<smem>>
      %375 = vector.extract_strided_slice %348 {offsets = [0, 80], sizes = [1, 256], strides = [1, 1]} : vector<1x352xf32> to vector<1x256xf32>
      %376 = vector.broadcast %374 : f32 to vector<1x256xf32>
      %377 = arith.mulf %376, %375 : vector<1x256xf32>
      %378 = arith.addf %373, %377 : vector<1x256xf32>
      %c94 = arith.constant 94 : index
      %379 = memref.load %arg3[%c94] : memref<98xf32, #tpu.memory_space<smem>>
      %380 = vector.extract_strided_slice %348 {offsets = [0, 96], sizes = [1, 256], strides = [1, 1]} : vector<1x352xf32> to vector<1x256xf32>
      %381 = vector.broadcast %379 : f32 to vector<1x256xf32>
      %382 = arith.mulf %381, %380 : vector<1x256xf32>
      %383 = arith.addf %378, %382 : vector<1x256xf32>
      %cst_67 = arith.constant 0.000000e+00 : f32
      %384 = vector.broadcast %cst_67 : f32 to vector<1x256xf32>
      %385 = arith.select %308, %383, %384 : vector<1x256xi1>, vector<1x256xf32>
      %386 = arith.addf %299, %385 : vector<1x256xf32>
      %c1_i32_68 = arith.constant 1 : i32
      %387 = vector.broadcast %c1_i32_68 : i32 to vector<1x256xi32>
      %388 = arith.addi %37, %387 : vector<1x256xi32>
      %c0_i32_69 = arith.constant 0 : i32
      %389 = vector.broadcast %c0_i32_69 : i32 to vector<1x256xi32>
      %390 = arith.cmpi sge, %388, %389 : vector<1x256xi32>
      %c1_i32_70 = arith.constant 1 : i32
      %391 = vector.broadcast %c1_i32_70 : i32 to vector<1x256xi32>
      %392 = arith.addi %37, %391 : vector<1x256xi32>
      %c16_i32_71 = arith.constant 16 : i32
      %393 = vector.broadcast %c16_i32_71 : i32 to vector<1x256xi32>
      %394 = arith.cmpi slt, %392, %393 : vector<1x256xi32>
      %395 = arith.andi %390, %394 : vector<1x256xi1>
      %cst_72 = arith.constant 0.000000e+00 : f32
      %396 = vector.broadcast %cst_72 : f32 to vector<1x256xf32>
      %c0_73 = arith.constant 0 : index
      %c0_74 = arith.constant 0 : index
      %c81 = arith.constant 81 : index
      %397 = vector.load %arg5[%c0_73, %c0_74, %c81] : memref<2x1x512xf32, #tpu.memory_space<vmem>>, vector<1x1x352xf32>
      %398 = vector.shape_cast %397 : vector<1x1x352xf32> to vector<1x352xf32>
      %c4 = arith.constant 4 : index
      %399 = memref.load %arg3[%c4] : memref<98xf32, #tpu.memory_space<smem>>
      %400 = vector.extract_strided_slice %398 {offsets = [0, 0], sizes = [1, 256], strides = [1, 1]} : vector<1x352xf32> to vector<1x256xf32>
      %401 = vector.broadcast %399 : f32 to vector<1x256xf32>
      %402 = arith.mulf %401, %400 : vector<1x256xf32>
      %403 = arith.addf %396, %402 : vector<1x256xf32>
      %c11 = arith.constant 11 : index
      %404 = memref.load %arg3[%c11] : memref<98xf32, #tpu.memory_space<smem>>
      %405 = vector.extract_strided_slice %398 {offsets = [0, 16], sizes = [1, 256], strides = [1, 1]} : vector<1x352xf32> to vector<1x256xf32>
      %406 = vector.broadcast %404 : f32 to vector<1x256xf32>
      %407 = arith.mulf %406, %405 : vector<1x256xf32>
      %408 = arith.addf %403, %407 : vector<1x256xf32>
      %c18 = arith.constant 18 : index
      %409 = memref.load %arg3[%c18] : memref<98xf32, #tpu.memory_space<smem>>
      %410 = vector.extract_strided_slice %398 {offsets = [0, 32], sizes = [1, 256], strides = [1, 1]} : vector<1x352xf32> to vector<1x256xf32>
      %411 = vector.broadcast %409 : f32 to vector<1x256xf32>
      %412 = arith.mulf %411, %410 : vector<1x256xf32>
      %413 = arith.addf %408, %412 : vector<1x256xf32>
      %c25 = arith.constant 25 : index
      %414 = memref.load %arg3[%c25] : memref<98xf32, #tpu.memory_space<smem>>
      %415 = vector.extract_strided_slice %398 {offsets = [0, 48], sizes = [1, 256], strides = [1, 1]} : vector<1x352xf32> to vector<1x256xf32>
      %416 = vector.broadcast %414 : f32 to vector<1x256xf32>
      %417 = arith.mulf %416, %415 : vector<1x256xf32>
      %418 = arith.addf %413, %417 : vector<1x256xf32>
      %c32 = arith.constant 32 : index
      %419 = memref.load %arg3[%c32] : memref<98xf32, #tpu.memory_space<smem>>
      %420 = vector.extract_strided_slice %398 {offsets = [0, 64], sizes = [1, 256], strides = [1, 1]} : vector<1x352xf32> to vector<1x256xf32>
      %421 = vector.broadcast %419 : f32 to vector<1x256xf32>
      %422 = arith.mulf %421, %420 : vector<1x256xf32>
      %423 = arith.addf %418, %422 : vector<1x256xf32>
      %c39 = arith.constant 39 : index
      %424 = memref.load %arg3[%c39] : memref<98xf32, #tpu.memory_space<smem>>
      %425 = vector.extract_strided_slice %398 {offsets = [0, 80], sizes = [1, 256], strides = [1, 1]} : vector<1x352xf32> to vector<1x256xf32>
      %426 = vector.broadcast %424 : f32 to vector<1x256xf32>
      %427 = arith.mulf %426, %425 : vector<1x256xf32>
      %428 = arith.addf %423, %427 : vector<1x256xf32>
      %c46 = arith.constant 46 : index
      %429 = memref.load %arg3[%c46] : memref<98xf32, #tpu.memory_space<smem>>
      %430 = vector.extract_strided_slice %398 {offsets = [0, 96], sizes = [1, 256], strides = [1, 1]} : vector<1x352xf32> to vector<1x256xf32>
      %431 = vector.broadcast %429 : f32 to vector<1x256xf32>
      %432 = arith.mulf %431, %430 : vector<1x256xf32>
      %433 = arith.addf %428, %432 : vector<1x256xf32>
      %c1_75 = arith.constant 1 : index
      %c0_76 = arith.constant 0 : index
      %c81_77 = arith.constant 81 : index
      %434 = vector.load %arg5[%c1_75, %c0_76, %c81_77] : memref<2x1x512xf32, #tpu.memory_space<vmem>>, vector<1x1x352xf32>
      %435 = vector.shape_cast %434 : vector<1x1x352xf32> to vector<1x352xf32>
      %c53 = arith.constant 53 : index
      %436 = memref.load %arg3[%c53] : memref<98xf32, #tpu.memory_space<smem>>
      %437 = vector.extract_strided_slice %435 {offsets = [0, 0], sizes = [1, 256], strides = [1, 1]} : vector<1x352xf32> to vector<1x256xf32>
      %438 = vector.broadcast %436 : f32 to vector<1x256xf32>
      %439 = arith.mulf %438, %437 : vector<1x256xf32>
      %440 = arith.addf %433, %439 : vector<1x256xf32>
      %c60 = arith.constant 60 : index
      %441 = memref.load %arg3[%c60] : memref<98xf32, #tpu.memory_space<smem>>
      %442 = vector.extract_strided_slice %435 {offsets = [0, 16], sizes = [1, 256], strides = [1, 1]} : vector<1x352xf32> to vector<1x256xf32>
      %443 = vector.broadcast %441 : f32 to vector<1x256xf32>
      %444 = arith.mulf %443, %442 : vector<1x256xf32>
      %445 = arith.addf %440, %444 : vector<1x256xf32>
      %c67 = arith.constant 67 : index
      %446 = memref.load %arg3[%c67] : memref<98xf32, #tpu.memory_space<smem>>
      %447 = vector.extract_strided_slice %435 {offsets = [0, 32], sizes = [1, 256], strides = [1, 1]} : vector<1x352xf32> to vector<1x256xf32>
      %448 = vector.broadcast %446 : f32 to vector<1x256xf32>
      %449 = arith.mulf %448, %447 : vector<1x256xf32>
      %450 = arith.addf %445, %449 : vector<1x256xf32>
      %c74 = arith.constant 74 : index
      %451 = memref.load %arg3[%c74] : memref<98xf32, #tpu.memory_space<smem>>
      %452 = vector.extract_strided_slice %435 {offsets = [0, 48], sizes = [1, 256], strides = [1, 1]} : vector<1x352xf32> to vector<1x256xf32>
      %453 = vector.broadcast %451 : f32 to vector<1x256xf32>
      %454 = arith.mulf %453, %452 : vector<1x256xf32>
      %455 = arith.addf %450, %454 : vector<1x256xf32>
      %c81_78 = arith.constant 81 : index
      %456 = memref.load %arg3[%c81_78] : memref<98xf32, #tpu.memory_space<smem>>
      %457 = vector.extract_strided_slice %435 {offsets = [0, 64], sizes = [1, 256], strides = [1, 1]} : vector<1x352xf32> to vector<1x256xf32>
      %458 = vector.broadcast %456 : f32 to vector<1x256xf32>
      %459 = arith.mulf %458, %457 : vector<1x256xf32>
      %460 = arith.addf %455, %459 : vector<1x256xf32>
      %c88 = arith.constant 88 : index
      %461 = memref.load %arg3[%c88] : memref<98xf32, #tpu.memory_space<smem>>
      %462 = vector.extract_strided_slice %435 {offsets = [0, 80], sizes = [1, 256], strides = [1, 1]} : vector<1x352xf32> to vector<1x256xf32>
      %463 = vector.broadcast %461 : f32 to vector<1x256xf32>
      %464 = arith.mulf %463, %462 : vector<1x256xf32>
      %465 = arith.addf %460, %464 : vector<1x256xf32>
      %c95 = arith.constant 95 : index
      %466 = memref.load %arg3[%c95] : memref<98xf32, #tpu.memory_space<smem>>
      %467 = vector.extract_strided_slice %435 {offsets = [0, 96], sizes = [1, 256], strides = [1, 1]} : vector<1x352xf32> to vector<1x256xf32>
      %468 = vector.broadcast %466 : f32 to vector<1x256xf32>
      %469 = arith.mulf %468, %467 : vector<1x256xf32>
      %470 = arith.addf %465, %469 : vector<1x256xf32>
      %cst_79 = arith.constant 0.000000e+00 : f32
      %471 = vector.broadcast %cst_79 : f32 to vector<1x256xf32>
      %472 = arith.select %395, %470, %471 : vector<1x256xi1>, vector<1x256xf32>
      %473 = arith.addf %386, %472 : vector<1x256xf32>
      %c2_i32 = arith.constant 2 : i32
      %474 = vector.broadcast %c2_i32 : i32 to vector<1x256xi32>
      %475 = arith.addi %37, %474 : vector<1x256xi32>
      %c0_i32_80 = arith.constant 0 : i32
      %476 = vector.broadcast %c0_i32_80 : i32 to vector<1x256xi32>
      %477 = arith.cmpi sge, %475, %476 : vector<1x256xi32>
      %c2_i32_81 = arith.constant 2 : i32
      %478 = vector.broadcast %c2_i32_81 : i32 to vector<1x256xi32>
      %479 = arith.addi %37, %478 : vector<1x256xi32>
      %c16_i32_82 = arith.constant 16 : i32
      %480 = vector.broadcast %c16_i32_82 : i32 to vector<1x256xi32>
      %481 = arith.cmpi slt, %479, %480 : vector<1x256xi32>
      %482 = arith.andi %477, %481 : vector<1x256xi1>
      %cst_83 = arith.constant 0.000000e+00 : f32
      %483 = vector.broadcast %cst_83 : f32 to vector<1x256xf32>
      %c0_84 = arith.constant 0 : index
      %c0_85 = arith.constant 0 : index
      %c82 = arith.constant 82 : index
      %484 = vector.load %arg5[%c0_84, %c0_85, %c82] : memref<2x1x512xf32, #tpu.memory_space<vmem>>, vector<1x1x352xf32>
      %485 = vector.shape_cast %484 : vector<1x1x352xf32> to vector<1x352xf32>
      %c5 = arith.constant 5 : index
      %486 = memref.load %arg3[%c5] : memref<98xf32, #tpu.memory_space<smem>>
      %487 = vector.extract_strided_slice %485 {offsets = [0, 0], sizes = [1, 256], strides = [1, 1]} : vector<1x352xf32> to vector<1x256xf32>
      %488 = vector.broadcast %486 : f32 to vector<1x256xf32>
      %489 = arith.mulf %488, %487 : vector<1x256xf32>
      %490 = arith.addf %483, %489 : vector<1x256xf32>
      %c12 = arith.constant 12 : index
      %491 = memref.load %arg3[%c12] : memref<98xf32, #tpu.memory_space<smem>>
      %492 = vector.extract_strided_slice %485 {offsets = [0, 16], sizes = [1, 256], strides = [1, 1]} : vector<1x352xf32> to vector<1x256xf32>
      %493 = vector.broadcast %491 : f32 to vector<1x256xf32>
      %494 = arith.mulf %493, %492 : vector<1x256xf32>
      %495 = arith.addf %490, %494 : vector<1x256xf32>
      %c19 = arith.constant 19 : index
      %496 = memref.load %arg3[%c19] : memref<98xf32, #tpu.memory_space<smem>>
      %497 = vector.extract_strided_slice %485 {offsets = [0, 32], sizes = [1, 256], strides = [1, 1]} : vector<1x352xf32> to vector<1x256xf32>
      %498 = vector.broadcast %496 : f32 to vector<1x256xf32>
      %499 = arith.mulf %498, %497 : vector<1x256xf32>
      %500 = arith.addf %495, %499 : vector<1x256xf32>
      %c26 = arith.constant 26 : index
      %501 = memref.load %arg3[%c26] : memref<98xf32, #tpu.memory_space<smem>>
      %502 = vector.extract_strided_slice %485 {offsets = [0, 48], sizes = [1, 256], strides = [1, 1]} : vector<1x352xf32> to vector<1x256xf32>
      %503 = vector.broadcast %501 : f32 to vector<1x256xf32>
      %504 = arith.mulf %503, %502 : vector<1x256xf32>
      %505 = arith.addf %500, %504 : vector<1x256xf32>
      %c33 = arith.constant 33 : index
      %506 = memref.load %arg3[%c33] : memref<98xf32, #tpu.memory_space<smem>>
      %507 = vector.extract_strided_slice %485 {offsets = [0, 64], sizes = [1, 256], strides = [1, 1]} : vector<1x352xf32> to vector<1x256xf32>
      %508 = vector.broadcast %506 : f32 to vector<1x256xf32>
      %509 = arith.mulf %508, %507 : vector<1x256xf32>
      %510 = arith.addf %505, %509 : vector<1x256xf32>
      %c40 = arith.constant 40 : index
      %511 = memref.load %arg3[%c40] : memref<98xf32, #tpu.memory_space<smem>>
      %512 = vector.extract_strided_slice %485 {offsets = [0, 80], sizes = [1, 256], strides = [1, 1]} : vector<1x352xf32> to vector<1x256xf32>
      %513 = vector.broadcast %511 : f32 to vector<1x256xf32>
      %514 = arith.mulf %513, %512 : vector<1x256xf32>
      %515 = arith.addf %510, %514 : vector<1x256xf32>
      %c47 = arith.constant 47 : index
      %516 = memref.load %arg3[%c47] : memref<98xf32, #tpu.memory_space<smem>>
      %517 = vector.extract_strided_slice %485 {offsets = [0, 96], sizes = [1, 256], strides = [1, 1]} : vector<1x352xf32> to vector<1x256xf32>
      %518 = vector.broadcast %516 : f32 to vector<1x256xf32>
      %519 = arith.mulf %518, %517 : vector<1x256xf32>
      %520 = arith.addf %515, %519 : vector<1x256xf32>
      %c1_86 = arith.constant 1 : index
      %c0_87 = arith.constant 0 : index
      %c82_88 = arith.constant 82 : index
      %521 = vector.load %arg5[%c1_86, %c0_87, %c82_88] : memref<2x1x512xf32, #tpu.memory_space<vmem>>, vector<1x1x352xf32>
      %522 = vector.shape_cast %521 : vector<1x1x352xf32> to vector<1x352xf32>
      %c54 = arith.constant 54 : index
      %523 = memref.load %arg3[%c54] : memref<98xf32, #tpu.memory_space<smem>>
      %524 = vector.extract_strided_slice %522 {offsets = [0, 0], sizes = [1, 256], strides = [1, 1]} : vector<1x352xf32> to vector<1x256xf32>
      %525 = vector.broadcast %523 : f32 to vector<1x256xf32>
      %526 = arith.mulf %525, %524 : vector<1x256xf32>
      %527 = arith.addf %520, %526 : vector<1x256xf32>
      %c61 = arith.constant 61 : index
      %528 = memref.load %arg3[%c61] : memref<98xf32, #tpu.memory_space<smem>>
      %529 = vector.extract_strided_slice %522 {offsets = [0, 16], sizes = [1, 256], strides = [1, 1]} : vector<1x352xf32> to vector<1x256xf32>
      %530 = vector.broadcast %528 : f32 to vector<1x256xf32>
      %531 = arith.mulf %530, %529 : vector<1x256xf32>
      %532 = arith.addf %527, %531 : vector<1x256xf32>
      %c68 = arith.constant 68 : index
      %533 = memref.load %arg3[%c68] : memref<98xf32, #tpu.memory_space<smem>>
      %534 = vector.extract_strided_slice %522 {offsets = [0, 32], sizes = [1, 256], strides = [1, 1]} : vector<1x352xf32> to vector<1x256xf32>
      %535 = vector.broadcast %533 : f32 to vector<1x256xf32>
      %536 = arith.mulf %535, %534 : vector<1x256xf32>
      %537 = arith.addf %532, %536 : vector<1x256xf32>
      %c75 = arith.constant 75 : index
      %538 = memref.load %arg3[%c75] : memref<98xf32, #tpu.memory_space<smem>>
      %539 = vector.extract_strided_slice %522 {offsets = [0, 48], sizes = [1, 256], strides = [1, 1]} : vector<1x352xf32> to vector<1x256xf32>
      %540 = vector.broadcast %538 : f32 to vector<1x256xf32>
      %541 = arith.mulf %540, %539 : vector<1x256xf32>
      %542 = arith.addf %537, %541 : vector<1x256xf32>
      %c82_89 = arith.constant 82 : index
      %543 = memref.load %arg3[%c82_89] : memref<98xf32, #tpu.memory_space<smem>>
      %544 = vector.extract_strided_slice %522 {offsets = [0, 64], sizes = [1, 256], strides = [1, 1]} : vector<1x352xf32> to vector<1x256xf32>
      %545 = vector.broadcast %543 : f32 to vector<1x256xf32>
      %546 = arith.mulf %545, %544 : vector<1x256xf32>
      %547 = arith.addf %542, %546 : vector<1x256xf32>
      %c89 = arith.constant 89 : index
      %548 = memref.load %arg3[%c89] : memref<98xf32, #tpu.memory_space<smem>>
      %549 = vector.extract_strided_slice %522 {offsets = [0, 80], sizes = [1, 256], strides = [1, 1]} : vector<1x352xf32> to vector<1x256xf32>
      %550 = vector.broadcast %548 : f32 to vector<1x256xf32>
      %551 = arith.mulf %550, %549 : vector<1x256xf32>
      %552 = arith.addf %547, %551 : vector<1x256xf32>
      %c96 = arith.constant 96 : index
      %553 = memref.load %arg3[%c96] : memref<98xf32, #tpu.memory_space<smem>>
      %554 = vector.extract_strided_slice %522 {offsets = [0, 96], sizes = [1, 256], strides = [1, 1]} : vector<1x352xf32> to vector<1x256xf32>
      %555 = vector.broadcast %553 : f32 to vector<1x256xf32>
      %556 = arith.mulf %555, %554 : vector<1x256xf32>
      %557 = arith.addf %552, %556 : vector<1x256xf32>
      %cst_90 = arith.constant 0.000000e+00 : f32
      %558 = vector.broadcast %cst_90 : f32 to vector<1x256xf32>
      %559 = arith.select %482, %557, %558 : vector<1x256xi1>, vector<1x256xf32>
      %560 = arith.addf %473, %559 : vector<1x256xf32>
      %c3_i32 = arith.constant 3 : i32
      %561 = vector.broadcast %c3_i32 : i32 to vector<1x256xi32>
      %562 = arith.addi %37, %561 : vector<1x256xi32>
      %c0_i32_91 = arith.constant 0 : i32
      %563 = vector.broadcast %c0_i32_91 : i32 to vector<1x256xi32>
      %564 = arith.cmpi sge, %562, %563 : vector<1x256xi32>
      %c3_i32_92 = arith.constant 3 : i32
      %565 = vector.broadcast %c3_i32_92 : i32 to vector<1x256xi32>
      %566 = arith.addi %37, %565 : vector<1x256xi32>
      %c16_i32_93 = arith.constant 16 : i32
      %567 = vector.broadcast %c16_i32_93 : i32 to vector<1x256xi32>
      %568 = arith.cmpi slt, %566, %567 : vector<1x256xi32>
      %569 = arith.andi %564, %568 : vector<1x256xi1>
      %cst_94 = arith.constant 0.000000e+00 : f32
      %570 = vector.broadcast %cst_94 : f32 to vector<1x256xf32>
      %c0_95 = arith.constant 0 : index
      %c0_96 = arith.constant 0 : index
      %c83 = arith.constant 83 : index
      %571 = vector.load %arg5[%c0_95, %c0_96, %c83] : memref<2x1x512xf32, #tpu.memory_space<vmem>>, vector<1x1x352xf32>
      %572 = vector.shape_cast %571 : vector<1x1x352xf32> to vector<1x352xf32>
      %c6 = arith.constant 6 : index
      %573 = memref.load %arg3[%c6] : memref<98xf32, #tpu.memory_space<smem>>
      %574 = vector.extract_strided_slice %572 {offsets = [0, 0], sizes = [1, 256], strides = [1, 1]} : vector<1x352xf32> to vector<1x256xf32>
      %575 = vector.broadcast %573 : f32 to vector<1x256xf32>
      %576 = arith.mulf %575, %574 : vector<1x256xf32>
      %577 = arith.addf %570, %576 : vector<1x256xf32>
      %c13 = arith.constant 13 : index
      %578 = memref.load %arg3[%c13] : memref<98xf32, #tpu.memory_space<smem>>
      %579 = vector.extract_strided_slice %572 {offsets = [0, 16], sizes = [1, 256], strides = [1, 1]} : vector<1x352xf32> to vector<1x256xf32>
      %580 = vector.broadcast %578 : f32 to vector<1x256xf32>
      %581 = arith.mulf %580, %579 : vector<1x256xf32>
      %582 = arith.addf %577, %581 : vector<1x256xf32>
      %c20 = arith.constant 20 : index
      %583 = memref.load %arg3[%c20] : memref<98xf32, #tpu.memory_space<smem>>
      %584 = vector.extract_strided_slice %572 {offsets = [0, 32], sizes = [1, 256], strides = [1, 1]} : vector<1x352xf32> to vector<1x256xf32>
      %585 = vector.broadcast %583 : f32 to vector<1x256xf32>
      %586 = arith.mulf %585, %584 : vector<1x256xf32>
      %587 = arith.addf %582, %586 : vector<1x256xf32>
      %c27 = arith.constant 27 : index
      %588 = memref.load %arg3[%c27] : memref<98xf32, #tpu.memory_space<smem>>
      %589 = vector.extract_strided_slice %572 {offsets = [0, 48], sizes = [1, 256], strides = [1, 1]} : vector<1x352xf32> to vector<1x256xf32>
      %590 = vector.broadcast %588 : f32 to vector<1x256xf32>
      %591 = arith.mulf %590, %589 : vector<1x256xf32>
      %592 = arith.addf %587, %591 : vector<1x256xf32>
      %c34 = arith.constant 34 : index
      %593 = memref.load %arg3[%c34] : memref<98xf32, #tpu.memory_space<smem>>
      %594 = vector.extract_strided_slice %572 {offsets = [0, 64], sizes = [1, 256], strides = [1, 1]} : vector<1x352xf32> to vector<1x256xf32>
      %595 = vector.broadcast %593 : f32 to vector<1x256xf32>
      %596 = arith.mulf %595, %594 : vector<1x256xf32>
      %597 = arith.addf %592, %596 : vector<1x256xf32>
      %c41 = arith.constant 41 : index
      %598 = memref.load %arg3[%c41] : memref<98xf32, #tpu.memory_space<smem>>
      %599 = vector.extract_strided_slice %572 {offsets = [0, 80], sizes = [1, 256], strides = [1, 1]} : vector<1x352xf32> to vector<1x256xf32>
      %600 = vector.broadcast %598 : f32 to vector<1x256xf32>
      %601 = arith.mulf %600, %599 : vector<1x256xf32>
      %602 = arith.addf %597, %601 : vector<1x256xf32>
      %c48 = arith.constant 48 : index
      %603 = memref.load %arg3[%c48] : memref<98xf32, #tpu.memory_space<smem>>
      %604 = vector.extract_strided_slice %572 {offsets = [0, 96], sizes = [1, 256], strides = [1, 1]} : vector<1x352xf32> to vector<1x256xf32>
      %605 = vector.broadcast %603 : f32 to vector<1x256xf32>
      %606 = arith.mulf %605, %604 : vector<1x256xf32>
      %607 = arith.addf %602, %606 : vector<1x256xf32>
      %c1_97 = arith.constant 1 : index
      %c0_98 = arith.constant 0 : index
      %c83_99 = arith.constant 83 : index
      %608 = vector.load %arg5[%c1_97, %c0_98, %c83_99] : memref<2x1x512xf32, #tpu.memory_space<vmem>>, vector<1x1x352xf32>
      %609 = vector.shape_cast %608 : vector<1x1x352xf32> to vector<1x352xf32>
      %c55 = arith.constant 55 : index
      %610 = memref.load %arg3[%c55] : memref<98xf32, #tpu.memory_space<smem>>
      %611 = vector.extract_strided_slice %609 {offsets = [0, 0], sizes = [1, 256], strides = [1, 1]} : vector<1x352xf32> to vector<1x256xf32>
      %612 = vector.broadcast %610 : f32 to vector<1x256xf32>
      %613 = arith.mulf %612, %611 : vector<1x256xf32>
      %614 = arith.addf %607, %613 : vector<1x256xf32>
      %c62 = arith.constant 62 : index
      %615 = memref.load %arg3[%c62] : memref<98xf32, #tpu.memory_space<smem>>
      %616 = vector.extract_strided_slice %609 {offsets = [0, 16], sizes = [1, 256], strides = [1, 1]} : vector<1x352xf32> to vector<1x256xf32>
      %617 = vector.broadcast %615 : f32 to vector<1x256xf32>
      %618 = arith.mulf %617, %616 : vector<1x256xf32>
      %619 = arith.addf %614, %618 : vector<1x256xf32>
      %c69 = arith.constant 69 : index
      %620 = memref.load %arg3[%c69] : memref<98xf32, #tpu.memory_space<smem>>
      %621 = vector.extract_strided_slice %609 {offsets = [0, 32], sizes = [1, 256], strides = [1, 1]} : vector<1x352xf32> to vector<1x256xf32>
      %622 = vector.broadcast %620 : f32 to vector<1x256xf32>
      %623 = arith.mulf %622, %621 : vector<1x256xf32>
      %624 = arith.addf %619, %623 : vector<1x256xf32>
      %c76 = arith.constant 76 : index
      %625 = memref.load %arg3[%c76] : memref<98xf32, #tpu.memory_space<smem>>
      %626 = vector.extract_strided_slice %609 {offsets = [0, 48], sizes = [1, 256], strides = [1, 1]} : vector<1x352xf32> to vector<1x256xf32>
      %627 = vector.broadcast %625 : f32 to vector<1x256xf32>
      %628 = arith.mulf %627, %626 : vector<1x256xf32>
      %629 = arith.addf %624, %628 : vector<1x256xf32>
      %c83_100 = arith.constant 83 : index
      %630 = memref.load %arg3[%c83_100] : memref<98xf32, #tpu.memory_space<smem>>
      %631 = vector.extract_strided_slice %609 {offsets = [0, 64], sizes = [1, 256], strides = [1, 1]} : vector<1x352xf32> to vector<1x256xf32>
      %632 = vector.broadcast %630 : f32 to vector<1x256xf32>
      %633 = arith.mulf %632, %631 : vector<1x256xf32>
      %634 = arith.addf %629, %633 : vector<1x256xf32>
      %c90 = arith.constant 90 : index
      %635 = memref.load %arg3[%c90] : memref<98xf32, #tpu.memory_space<smem>>
      %636 = vector.extract_strided_slice %609 {offsets = [0, 80], sizes = [1, 256], strides = [1, 1]} : vector<1x352xf32> to vector<1x256xf32>
      %637 = vector.broadcast %635 : f32 to vector<1x256xf32>
      %638 = arith.mulf %637, %636 : vector<1x256xf32>
      %639 = arith.addf %634, %638 : vector<1x256xf32>
      %c97 = arith.constant 97 : index
      %640 = memref.load %arg3[%c97] : memref<98xf32, #tpu.memory_space<smem>>
      %641 = vector.extract_strided_slice %609 {offsets = [0, 96], sizes = [1, 256], strides = [1, 1]} : vector<1x352xf32> to vector<1x256xf32>
      %642 = vector.broadcast %640 : f32 to vector<1x256xf32>
      %643 = arith.mulf %642, %641 : vector<1x256xf32>
      %644 = arith.addf %639, %643 : vector<1x256xf32>
      %cst_101 = arith.constant 0.000000e+00 : f32
      %645 = vector.broadcast %cst_101 : f32 to vector<1x256xf32>
      %646 = arith.select %569, %644, %645 : vector<1x256xi1>, vector<1x256xf32>
      %647 = arith.addf %560, %646 : vector<1x256xf32>
      %648 = arith.negf %647 : vector<1x256xf32>
      %649 = math.exp %648 : vector<1x256xf32>
      %cst_102 = arith.constant 1.000000e+00 : f32
      %650 = vector.broadcast %cst_102 : f32 to vector<1x256xf32>
      %651 = arith.addf %650, %649 : vector<1x256xf32>
      %652 = arith.divf %650, %651 : vector<1x256xf32>
      %c0_103 = arith.constant 0 : index
      %c0_104 = arith.constant 0 : index
      %c0_105 = arith.constant 0 : index
      %653 = vector.load %arg4[%c0_103, %c0_104, %c0_105] : memref<1x1x256xf32, #tpu.memory_space<vmem>>, vector<1x1x256xf32>
      %654 = vector.shape_cast %653 : vector<1x1x256xf32> to vector<1x256xf32>
      %655 = vector.shape_cast %652 : vector<1x256xf32> to vector<1x1x256xf32>
      tpu.vector_store %arg4[%c0_103, %c0_104, %c0_105], %655 {strides = array<i32>} : memref<1x1x256xf32, #tpu.memory_space<vmem>>, vector<1x1x256xf32>,
    } else {
    }
    return
  }
  func.func @transform_0(%arg0: i32, %arg1: i32) -> (i32, i32, i32) {
    %c0_i32 = arith.constant 0 : i32
    %c0_i32_0 = arith.constant 0 : i32
    return %arg0, %arg1, %c0_i32 : i32, i32, i32
  }
  func.func @transform_1(%arg0: i32, %arg1: i32) -> i32 {
    %c0_i32 = arith.constant 0 : i32
    %c0_i32_0 = arith.constant 0 : i32
    return %c0_i32 : i32
  }
  func.func @transform_2(%arg0: i32, %arg1: i32) -> (i32, i32, i32) {
    %c0_i32 = arith.constant 0 : i32
    %c0_i32_0 = arith.constant 0 : i32
    %c0_i32_1 = arith.constant 0 : i32
    return %arg0, %c0_i32, %c0_i32_0 : i32, i32, i32
  }
}

</mosaic_0001>

<llo_original>
// kernel: mul.0
$region0: #{mul.0}
  #allocation0 [shape = 's32[1]{0}', space=sflag, size = 0x4, scoped, tag = 'scoped memory for mul.0']
  %s0 = inlined_call_operand.vmem [shape: f32[98], index: 0, kind: input, shape index: {}]
  %s1 = inlined_call_operand.vmem [shape: f32[98], index: 1, kind: input, shape index: {}]
  %s2 = inlined_call_operand.vmem [shape: f32[98], index: 2, kind: output, shape index: {}]
  %v3 = vld [vmem:[%s0] sm:$0x1]
  %v4 = vld [vmem:[%s1] sm:$0x1]
  %5 = xla_tuple %v3, %v4
  %6 = xla_tuple %5
  %v7 = vmul.f32 %v3, %v4
  %8 = xla_tuple %v7
  %9 = vst [vmem:[%s2] sm:$0x1] %v7

// kernel: spatial_attention.1
$region0: #{spatial_attention.1}
  #allocation0 [shape = 'u32[]', space=smem, size = 0x4, offset = 0x4, fixed_abs, tag = 'smem constant byte address 0x4 - core index']
  #allocation1 [shape = 'u32[144,128]{1,0:T(1,128)}', space=vmem, size = 0x12000, scoped, tag = 'internal scratch']
  #allocation2 [shape = 'f32[2,1,512]{2,1,0:T(1,128)}', space=vmem, size = 0x1000, scoped, tag = 'scratch operand']
  %s0 = inlined_call_operand.vmem [shape: f32[2,4,256], index: 0, kind: input, shape index: {}]
  %s1 = inlined_call_operand.vmem [shape: f32[98], index: 1, kind: input, shape index: {}]
  %s2 = inlined_call_operand.vmem [shape: f32[2,1,256], index: 2, kind: output, shape index: {}]
  %s3 = sld [smem:[#allocation0]]
  $region53: #{spatial_attention.1} parent=0
    _
  %s5 = ssub.s32 1, %s3
  %s6 = scalar_select 0, %s5, %s3
  $region1: #{spatial_attention.1} parent=0
    #allocation3 [shape = 'u8[512]{0}', space=smem, size = 0x200, scoped, tag = 'input window, operand 1, single buffered']
    #allocation4 [shape = 's32[2]{0}', space=sflag, size = 0x8, scoped, tag = 'scoped memory for spatial_attention.1']
    %7 = vsyncpa [#allocation4], 0
    loop: start=0, step=1, limit=4
    $region2: #{spatial_attention.1} parent=1 // loop_pre_header
      _
    $region3: #{spatial_attention.1} parent=1 // loop_header
      %s9 = sphi 0, %s13
      %p10 = scmp.ge.s32.totalorder %s9, 4
      %s16 = sphi 0, %s28
      %s17 = sphi 0, %s24
      %s18 = sphi 0, %s16
      %s19 = sphi 0, %s17
      %s20 = sphi 0, %s18
      %s21 = sphi 0, %s19
      %s33 = sphi 0, %s35
      %s36 = sphi 0, %s33
      %s37 = sphi 0, %s36
      %s53 = sphi 0, %s37
      %s57 = sphi 0, %s57
      %s59 = sphi 0, %s57
      %s60 = sphi 0, %s59
      %s74 = sphi 0, %s60
      %s80 = sphi 0, %s82
      %s83 = sphi 0, %s80
      %s84 = sphi 0, %s83
      %s100 = sphi 0, %s84
    $region4: #{spatial_attention.1} parent=1 // loop_header_branch
      %12 = sbr.rel (%p10) target = $region8
    $region5: #{spatial_attention.1} parent=1 // loop_body
      %s14 = ssub.s32 %s9, 1
      %s15 = ssub.s32 %s9, 2
      %s22 = sadd.s32 1, %s17
      %p23 = scmp.ge.s32.totalorder %s22, 1
      %s24 = scalar_select %p23, 0, %s22
      %s25 = sadd.s32 1, %s16
      %s26 = scalar_select %p23, %s25, %s16
      %p27 = scmp.ge.s32.totalorder %s26, 2
      %s28 = scalar_select %p27, 0, %s26
      %s29 = ssub.s32 %s16, %s28
      %s30 = ssub.s32 %s17, %s24
      %s31 = sor.u32 %s29, %s30
      %p32 = scmp.eq.s32.totalorder %s31, 0
      %s34 = sadd.s32 %s33, 1
      %s35 = scalar_select %p32, %s33, %s34
      %p38 = pneg %p32
      %p39 = scmp.eq.s32.totalorder %s9, 1
      %p40 = por %p38, %p39
      %p41 = scmp.ne.s32.totalorder %s33, %s36
      %p42 = scmp.eq.s32.totalorder %s9, 0
      %p43 = por %p41, %p42
      %p44 = scmp.ne.s32.totalorder %s33, %s36
      %p45 = scmp.eq.s32.totalorder %s14, 1
      %p46 = por %p44, %p45
      %p47 = scmp.ne.s32.totalorder %s36, %s37
      %p48 = scmp.eq.s32.totalorder %s14, 0
      %p49 = por %p47, %p48
      %p50 = scmp.ne.s32.totalorder %s36, %s37
      %p51 = scmp.eq.s32.totalorder %s15, 1
      %p52 = por %p50, %p51
      %p54 = scmp.ne.s32.totalorder %s37, %s53
      %p55 = scmp.eq.s32.totalorder %s15, 0
      %p56 = por %p54, %p55
      %s58 = sadd.s32 %s57, 1
      %p61 = scmp.eq.s32.totalorder %s9, 1
      %p62 = scmp.ne.s32.totalorder %s57, %s59
      %p63 = scmp.eq.s32.totalorder %s9, 0
      %p64 = por %p62, %p63
      %p65 = scmp.ne.s32.totalorder %s57, %s59
      %p66 = scmp.eq.s32.totalorder %s14, 1
      %p67 = por %p65, %p66
      %p68 = scmp.ne.s32.totalorder %s59, %s60
      %p69 = scmp.eq.s32.totalorder %s14, 0
      %p70 = por %p68, %p69
      %p71 = scmp.ne.s32.totalorder %s59, %s60
      %p72 = scmp.eq.s32.totalorder %s15, 1
      %p73 = por %p71, %p72
      %p75 = scmp.ne.s32.totalorder %s60, %s74
      %p76 = scmp.eq.s32.totalorder %s15, 0
      %p77 = por %p75, %p76
      %s78 = ssub.s32 %s16, %s28
      %p79 = scmp.eq.s32.totalorder %s78, 0
      %s81 = sadd.s32 %s80, 1
      %s82 = scalar_select %p79, %s80, %s81
      %p85 = pneg %p79
      %p86 = scmp.eq.s32.totalorder %s9, 1
      %p87 = por %p85, %p86
      %p88 = scmp.ne.s32.totalorder %s80, %s83
      %p89 = scmp.eq.s32.totalorder %s9, 0
      %p90 = por %p88, %p89
      %p91 = scmp.ne.s32.totalorder %s80, %s83
      %p92 = scmp.eq.s32.totalorder %s14, 1
      %p93 = por %p91, %p92
      %p94 = scmp.ne.s32.totalorder %s83, %s84
      %p95 = scmp.eq.s32.totalorder %s14, 0
      %p96 = por %p94, %p95
      %p97 = scmp.ne.s32.totalorder %s83, %s84
      %p98 = scmp.eq.s32.totalorder %s15, 1
      %p99 = por %p97, %p98
      %p101 = scmp.ne.s32.totalorder %s84, %s100
      %p102 = scmp.eq.s32.totalorder %s15, 0
      %p103 = por %p101, %p102
      %p104 = scmp.le.s32.totalorder 1, %s9
      %p105 = scmp.lt.s32.totalorder %s9, 3
      %p106 = pnand %p104, %p105
      %p107 = pneg %p106
      // Predicated region
      $region9: #{spatial_attention.1} parent=5 // pred_check
        _
      $region10: #{spatial_attention.1} parent=5 // pred_check_branch
        %109 = sbr.rel (%p106) target = $region12
      $region11: #{spatial_attention.1} parent=5 // pred_region
        %s110 = ssub.s32 %s9, 1
        // Predicated region
        $region13: #{spatial_attention.1} parent=11 // pred_check
          %p111 = pneg %p70
        $region14: #{spatial_attention.1} parent=11 // pred_check_branch
          %113 = sbr.rel (%p111) target = $region16
        $region15: #{spatial_attention.1} parent=11 // pred_region
          %s115 = ssub.s32 16, 16
          %116 = vsyncadd [#allocation4], %s115
          %s118 = sshll.u32 %s1, 4
          %s119 = int_to_ptr.vmem [resolvable:$true] %s118
          %121 = dma.vmem_to_smem %s119, 16, [#allocation3], [#allocation4]
        $region16: #{spatial_attention.1} parent=11 // pred_fallthru
          _
      $region12: #{spatial_attention.1} parent=5 // pred_fallthru
        _
      %p122 = scmp.lt.s32.totalorder %s9, 2
      // Predicated region
      $region17: #{spatial_attention.1} parent=5 // pred_check
        %p123 = pneg %p122
      $region18: #{spatial_attention.1} parent=5 // pred_check_branch
        %125 = sbr.rel (%p123) target = $region20
      $region19: #{spatial_attention.1} parent=5 // pred_region
        // Predicated region
        $region21: #{spatial_attention.1} parent=19 // pred_check
          %p126 = pneg %p43
        $region22: #{spatial_attention.1} parent=19 // pred_check_branch
          %128 = sbr.rel (%p126) target = $region24
        $region23: #{spatial_attention.1} parent=19 // pred_region
          %p129 = scmp.lt.s32.totalorder %s16, 1
          %s130 = scalar_select %p129, %s16, 1
          %p131 = scmp.lt.s32.totalorder %s17, 0
          %s132 = scalar_select %p131, %s17, 0
          %s133 = smul.addr %s132, 2
          %s134 = smul.addr %s130, 2
          %s135 = sadd.s32 %s133, %s134
          %s136 = smul.addr %s135, 4
          %s137 = scalar_lea.vmem %s0, %s136
        $region24: #{spatial_attention.1} parent=19 // pred_fallthru
          _
      $region20: #{spatial_attention.1} parent=5 // pred_fallthru
        _
      %p138 = scmp.le.s32.totalorder 1, %s9
      %p139 = scmp.lt.s32.totalorder %s9, 3
      %p140 = pnand %p138, %p139
      %p141 = pneg %p140
      // Predicated region
      $region25: #{spatial_attention.1} parent=5 // pred_check
        _
      $region26: #{spatial_attention.1} parent=5 // pred_check_branch
        %143 = sbr.rel (%p140) target = $region28
      $region27: #{spatial_attention.1} parent=5 // pred_region
        %s144 = ssub.s32 %s9, 1
        // Predicated region
        $region29: #{spatial_attention.1} parent=27 // pred_check
          %p145 = pneg %p70
        $region30: #{spatial_attention.1} parent=27 // pred_check_branch
          %147 = sbr.rel (%p145) target = $region32
        $region31: #{spatial_attention.1} parent=27 // pred_region
          %148 = dma.done [#allocation4], 16
        $region32: #{spatial_attention.1} parent=27 // pred_fallthru
          _
        %149 = sfence
        %p150 = scmp.lt.s32.totalorder %s18, 1
        %s151 = scalar_select %p150, %s18, 1
        %p152 = scmp.lt.s32.totalorder %s19, 0
        %s153 = scalar_select %p152, %s19, 0
        %s154 = smul.addr %s153, 2
        %s155 = smul.addr %s151, 2
        %s156 = sadd.s32 %s154, %s155
        %s157 = smul.addr %s156, 4
        %s158 = scalar_lea.vmem %s0, %s157
        %p159 = pneg %p49
        %p160 = pneg %p46
        %p161 = pneg %p70
        %p162 = pneg %p67
        %p163 = pneg %p96
        %p164 = pneg %p93
        %p165 = scmp.lt.s32.totalorder %s18, 1
        %s166 = scalar_select %p165, %s18, 1
        %s167 = smul.addr %s166, 2
        %s168 = scalar_lea.vmem %s2, %s167
        %p169 = scmp.lt.s32.totalorder %s18, 1
        %s170 = scalar_select %p169, %s18, 1
        %p171 = scmp.lt.s32.totalorder %s19, 0
        %s172 = scalar_select %p171, %s19, 0
        %s173 = smul.addr %s172, 2
        %s174 = smul.addr %s170, 2
        %s175 = sadd.s32 %s173, %s174
        %s176 = smul.addr %s175, 4
        %s177 = scalar_lea.vmem %s0, %s176
        %p178 = scmp.lt.s32.totalorder %s18, 1
        %s179 = scalar_select %p178, %s18, 1
        %s180 = smul.addr %s179, 2
        %s181 = scalar_lea.vmem %s2, %s180
        %p182 = scmp.eq.s32.totalorder %s19, 0
        // Predicated region
        $region33: #{spatial_attention.1} parent=27 // pred_check
          %p183 = pneg %p182
        $region34: #{spatial_attention.1} parent=27 // pred_check_branch
          %185 = sbr.rel (%p183) target = $region36
        $region35: #{spatial_attention.1} parent=27 // pred_region
          %v186 = vlaneseq
          %vm187 = vcmp.ge.s32.totalorder %v186, 0
          %vm188 = vcmp.lt.s32.totalorder %v186, 512
          %vm189 = vmand %vm187, %vm188
          %190 = vst.msk [vmem:[#allocation2] sm:$0xf] %vm189, 0.0
          %191 = vst.msk [vmem:[#allocation2 + $0x4] sm:$0xf] %vm189, 0.0
          %s192 = scalar_lea.vmem [#allocation2], 4
          %vm193 = vcmp.lt.s32.totalorder %v186, 256
          %vm194 = vmand %vm187, %vm193
          %195 = vst.msk [vmem:[%s192 + $0x1] sm:$0x3] %vm194, -inf
        $region36: #{spatial_attention.1} parent=27 // pred_fallthru
          _
        %v196 = vld [vmem:[%s177] sm:$0xff]
        %v198 = vcombine.high %v196, %v196
        %vm200 = vcmask 1043456
        %v201 = vsel %vm200, %v196, 0.0
        %v202 = vrot.slane %v201, 4
        %v203 = vadd.f32 %v201, %v202
        %v204 = vrot.slane %v203, 2
        %v205 = vadd.f32 %v203, %v204
        %v206 = vrot.slane %v205, 1
        %v207 = vadd.f32 %v205, %v206
        %v208 = vsel %vm200, %v198, 0.0
        %v209 = vrot.slane %v208, 4
        %v210 = vadd.f32 %v208, %v209
        %v211 = vrot.slane %v210, 2
        %v212 = vadd.f32 %v210, %v211
        %v213 = vrot.slane %v212, 1
        %v214 = vadd.f32 %v212, %v213
        %v215 = vsel %vm200, %v196, -inf
        %v216 = vrot.slane %v215, 4
        %v217 = vmax.f32 %v215, %v216
        %v218 = vrot.slane %v217, 2
        %v219 = vmax.f32 %v217, %v218
        %v220 = vrot.slane %v219, 1
        %v221 = vmax.f32 %v219, %v220
        %v222 = vsel %vm200, %v198, -inf
        %v223 = vrot.slane %v222, 4
        %v224 = vmax.f32 %v222, %v223
        %v225 = vrot.slane %v224, 2
        %v226 = vmax.f32 %v224, %v225
        %v227 = vrot.slane %v226, 1
        %v228 = vmax.f32 %v226, %v227
        %v229 = vld [vmem:[#allocation2 + $0x1] sm:$0x3]
        %v232 = vcombine.low %v207, %v214
        %v234 = vunpack.c.l.s4 1966171168
        %v235 = vunpack.c.0.s8 %v234
        %v236 = vlaneseq
        %v237 = vshrl.u32 %v236, 7
        %v238 = vsub.s32 %v235, %v237
        %v239 = vrot.slane %v232, %v238
        %v241 = vunpack.c.l.s4 1966171168
        %v242 = vunpack.c.0.s8 %v241
        %v243 = vlaneseq
        %v244 = vshrl.u32 %v243, 7
        %v245 = vsub.s32 %v242, %v244
        %v246 = vrot.slane %v239, %v245
        %v248 = vadd.f32 %v229, %v246
        %v249 = vlaneseq
        %vm250 = vcmp.ge.s32.totalorder %v249, 0
        %vm251 = vcmp.lt.s32.totalorder %v249, 256
        %vm252 = vmand %vm250, %vm251
        %253 = vst.msk [vmem:[#allocation2 + $0x1] sm:$0x3] %vm252, %v248
        %s254 = scalar_lea.vmem [#allocation2], 4
        %v255 = vld [vmem:[%s254 + $0x1] sm:$0x3]
        %v258 = vcombine.low %v221, %v228
        %v260 = vunpack.c.l.s4 1966171168
        %v261 = vunpack.c.0.s8 %v260
        %v262 = vlaneseq
        %v263 = vshrl.u32 %v262, 7
        %v264 = vsub.s32 %v261, %v263
        %v265 = vrot.slane %v258, %v264
        %v267 = vunpack.c.l.s4 1966171168
        %v268 = vunpack.c.0.s8 %v267
        %v269 = vlaneseq
        %v270 = vshrl.u32 %v269, 7
        %v271 = vsub.s32 %v268, %v270
        %v272 = vrot.slane %v265, %v271
        %v274 = vmax.f32 %v255, %v272
        %275 = vst.msk [vmem:[%s254 + $0x1] sm:$0x3] %vm252, %v274
        // Predicated region
        $region37: #{spatial_attention.1} parent=27 // pred_check
          %p276 = pneg %p182
        $region38: #{spatial_attention.1} parent=27 // pred_check_branch
          %278 = sbr.rel (%p276) target = $region40
        $region39: #{spatial_attention.1} parent=27 // pred_region
          %v279 = vlaneseq
          %v280 = vand.u32 %v279, 127
          %v281 = vadd.s32 %v280, 128
          %vm282 = vcmp.lt.s32.totalorder %v280, 0
          %v283 = vsub.s32 0, %v280
          %v284 = vsel %vm282, %v283, %v280
          %v285 = vshrl.u32 %v284, 4
          %v286 = vand.u32 %v284, 15
          %v287 = vsub.s32 0, %v286
          %v288 = vsel %vm282, %v287, %v286
          %vm289 = vcmp.lt.s32.totalorder %v281, 0
          %v290 = vsub.s32 0, %v281
          %v291 = vsel %vm289, %v290, %v281
          %v292 = vshrl.u32 %v291, 4
          %v293 = vand.u32 %v291, 15
          %v294 = vsub.s32 0, %v293
          %v295 = vsel %vm289, %v294, %v293
          %vm296 = vcmp.ne.s32.totalorder %v288, 0
          %vm297 = vcmp.ne.s32.totalorder %v295, 0
          %vm298 = vcmp.lt.s32.totalorder %v288, 0
          %vm299 = vcmp.lt.s32.totalorder %v295, 0
          %vm300 = vmand %vm298, %vm296
          %vm301 = vmand %vm299, %vm297
          %v302 = vadd.s32 %v288, 16
          %v303 = vadd.s32 %v295, 16
          %v304 = vsel %vm300, %v302, %v288
          %v305 = vsel %vm301, %v303, %v295
          %v306 = vadd.s32 %v304, 4294967293
          %v307 = vadd.s32 %v305, 4294967293
          %vm308 = vcmp.ge.s32.totalorder %v306, 0
          %vm309 = vcmp.ge.s32.totalorder %v307, 0
          %vm310 = vcmp.lt.s32.totalorder %v306, 16
          %vm311 = vcmp.lt.s32.totalorder %v307, 16
          %vm312 = vmand %vm308, %vm310
          %vm313 = vmand %vm309, %vm311
          %v314 = vld [vmem:[#allocation2] sm:$0xf]
          %s315 = sld [smem:[#allocation3]]
          %v316 = vstv %s315
          %v317 = vmul.f32 %v316, %v314
          %v318 = vadd.f32 %v317, 0.0
          %s319 = sld [smem:[#allocation3 + $0x7]]
          %v320 = vstv %s319
          %v321 = vmul.f32 %v320, %v314
          %323 = vrot.lane.b32.xlu0 %v321, 112
          %v324 = vpop.permute.xlu0 %323
          %v325 = vrot.slane %v324, 1
          %vm326 = vcmask 916480
          %v327 = vsel %vm326, %v324, %v325
          %v329 = vadd.f32 %v318, %v327
          %s330 = sld [smem:[#allocation3 + $0xe]]
          %v331 = vstv %s330
          %v332 = vmul.f32 %v331, %v314
          %334 = vrot.lane.b32.xlu0 %v332, 96
          %v335 = vpop.permute.xlu0 %334
          %v336 = vrot.slane %v335, 1
          %vm337 = vcmask 785408
          %v338 = vsel %vm337, %v335, %v336
          %v340 = vadd.f32 %v329, %v338
          %s341 = sld [smem:[#allocation3 + $0x15]]
          %v342 = vstv %s341
          %v343 = vmul.f32 %v342, %v314
          %345 = vrot.lane.b32.xlu0 %v343, 80
          %v346 = vpop.permute.xlu0 %345
          %v347 = vrot.slane %v346, 1
          %vm348 = vcmask 654336
          %v349 = vsel %vm348, %v346, %v347
          %v351 = vadd.f32 %v340, %v349
          %s352 = sld [smem:[#allocation3 + $0x1c]]
          %v353 = vstv %s352
          %355 = vrot.lane.b32.xlu0 %v314, 115
          %v356 = vpop.permute.xlu0 %355
          %v357 = vrot.slane %v356, 1
          %v358 = vrot.slane %v356, 2
          %vm359 = vcmask 941056
          %v360 = vsel %vm359, %v357, %v358
          %v362 = vmul.f32 %v353, %v360
          %364 = vrot.lane.b32.xlu0 %v362, 77
          %v365 = vpop.permute.xlu0 %364
          %v366 = vrot.slane %v365, 7
          %vm367 = vcmask 629760
          %v368 = vsel %vm367, %v366, %v365
          %v370 = vadd.f32 %v351, %v368
          %s371 = sld [smem:[#allocation3 + $0x23]]
          %v372 = vstv %s371
          %373 = vrot.lane.b32.xlu0 %v314, 99
          %v374 = vpop.permute.xlu0 %373
          %v375 = vrot.slane %v374, 1
          %v376 = vrot.slane %v374, 2
          %vm377 = vcmask 809984
          %v378 = vsel %vm377, %v375, %v376
          %v380 = vmul.f32 %v372, %v378
          %382 = vrot.lane.b32.xlu0 %v380, 77
          %v383 = vpop.permute.xlu0 %382
          %v384 = vrot.slane %v383, 7
          %v385 = vsel %vm367, %v384, %v383
          %v387 = vadd.f32 %v370, %v385
          %s388 = sld [smem:[#allocation3 + $0x2a]]
          %v389 = vstv %s388
          %390 = vrot.lane.b32.xlu0 %v314, 83
          %v391 = vpop.permute.xlu0 %390
          %v392 = vrot.slane %v391, 1
          %v393 = vrot.slane %v391, 2
          %vm394 = vcmask 678912
          %v395 = vsel %vm394, %v392, %v393
          %v397 = vmul.f32 %v389, %v395
          %399 = vrot.lane.b32.xlu0 %v397, 77
          %v400 = vpop.permute.xlu0 %399
          %v401 = vrot.slane %v400, 7
          %v402 = vsel %vm367, %v401, %v400
          %v404 = vadd.f32 %v387, %v402
          %v405 = vld [vmem:[%s254] sm:$0xf]
          %s406 = sld [smem:[#allocation3 + $0x31]]
          %v407 = vstv %s406
          %v408 = vmul.f32 %v407, %v405
          %v409 = vadd.f32 %v404, %v408
          %s410 = sld [smem:[#allocation3 + $0x38]]
          %v411 = vstv %s410
          %v412 = vmul.f32 %v411, %v405
          %414 = vrot.lane.b32.xlu0 %v412, 112
          %v415 = vpop.permute.xlu0 %414
          %v416 = vrot.slane %v415, 1
          %v417 = vsel %vm326, %v415, %v416
          %v419 = vadd.f32 %v409, %v417
          %s420 = sld [smem:[#allocation3 + $0x3f]]
          %v421 = vstv %s420
          %v422 = vmul.f32 %v421, %v405
          %424 = vrot.lane.b32.xlu0 %v422, 96
          %v425 = vpop.permute.xlu0 %424
          %v426 = vrot.slane %v425, 1
          %v427 = vsel %vm337, %v425, %v426
          %v429 = vadd.f32 %v419, %v427
          %s430 = sld [smem:[#allocation3 + $0x46]]
          %v431 = vstv %s430
          %v432 = vmul.f32 %v431, %v405
          %434 = vrot.lane.b32.xlu0 %v432, 80
          %v435 = vpop.permute.xlu0 %434
          %v436 = vrot.slane %v435, 1
          %v437 = vsel %vm348, %v435, %v436
          %v439 = vadd.f32 %v429, %v437
          %s440 = sld [smem:[#allocation3 + $0x4d]]
          %v441 = vstv %s440
          %443 = vrot.lane.b32.xlu0 %v405, 115
          %v444 = vpop.permute.xlu0 %443
          %v445 = vrot.slane %v444, 1
          %v446 = vrot.slane %v444, 2
          %v447 = vsel %vm359, %v445, %v446
          %v449 = vmul.f32 %v441, %v447
          %451 = vrot.lane.b32.xlu0 %v449, 77
          %v452 = vpop.permute.xlu0 %451
          %v453 = vrot.slane %v452, 7
          %v454 = vsel %vm367, %v453, %v452
          %v456 = vadd.f32 %v439, %v454
          %s457 = sld [smem:[#allocation3 + $0x54]]
          %v458 = vstv %s457
          %459 = vrot.lane.b32.xlu0 %v405, 99
          %v460 = vpop.permute.xlu0 %459
          %v461 = vrot.slane %v460, 1
          %v462 = vrot.slane %v460, 2
          %v463 = vsel %vm377, %v461, %v462
          %v465 = vmul.f32 %v458, %v463
          %467 = vrot.lane.b32.xlu0 %v465, 77
          %v468 = vpop.permute.xlu0 %467
          %v469 = vrot.slane %v468, 7
          %v470 = vsel %vm367, %v469, %v468
          %v472 = vadd.f32 %v456, %v470
          %s473 = sld [smem:[#allocation3 + $0x5b]]
          %v474 = vstv %s473
          %475 = vrot.lane.b32.xlu0 %v405, 83
          %v476 = vpop.permute.xlu0 %475
          %v477 = vrot.slane %v476, 1
          %v478 = vrot.slane %v476, 2
          %v479 = vsel %vm394, %v477, %v478
          %v481 = vmul.f32 %v474, %v479
          %483 = vrot.lane.b32.xlu0 %v481, 77
          %v484 = vpop.permute.xlu0 %483
          %v485 = vrot.slane %v484, 7
          %v486 = vsel %vm367, %v485, %v484
          %v488 = vadd.f32 %v472, %v486
          %v490 = vlaneseq
          %v491 = vshrl.u32 %v490, 7
          %v492 = vsub.s32 0, %v491
          %v493 = vrot.slane %v488, %v492
          %v494 = vlaneseq
          %v495 = vshrl.u32 %v494, 7
          %v496 = vsub.s32 1, %v495
          %v497 = vrot.slane %v488, %v496
          %v498 = vlaneseq
          %v499 = vshrl.u32 %v498, 7
          %v500 = vsub.s32 2, %v499
          %v501 = vrot.slane %v488, %v500
          %502 = vrot.lane.b32.xlu0 %v493, 51
          %v503 = vpop.permute.xlu0 %502
          %504 = vrot.lane.b32.xlu0 %v497, 51
          %v505 = vpop.permute.xlu0 %504
          %506 = vrot.lane.b32.xlu0 %v501, 51
          %v507 = vpop.permute.xlu0 %506
          %vm508 = vcmask 416768
          %v509 = vsel %vm508, %v503, %v505
          %v510 = vsel %vm508, %v505, %v507
          %v513 = vsel %vm312, %v509, 0.0
          %v514 = vsel %vm313, %v510, 0.0
          %v515 = vadd.f32 %v513, 0.0
          %v516 = vadd.f32 %v514, 0.0
          %v517 = vadd.s32 %v304, 4294967294
          %v518 = vadd.s32 %v305, 4294967294
          %vm519 = vcmp.ge.s32.totalorder %v517, 0
          %vm520 = vcmp.ge.s32.totalorder %v518, 0
          %vm521 = vcmp.lt.s32.totalorder %v517, 16
          %vm522 = vcmp.lt.s32.totalorder %v518, 16
          %vm523 = vmand %vm519, %vm521
          %vm524 = vmand %vm520, %vm522
          %s525 = sld [smem:[#allocation3 + $0x1]]
          %v526 = vstv %s525
          %v527 = vmul.f32 %v526, %v314
          %v528 = vadd.f32 %v527, 0.0
          %s529 = sld [smem:[#allocation3 + $0x8]]
          %v530 = vstv %s529
          %v531 = vmul.f32 %v530, %v314
          %533 = vrot.lane.b32.xlu0 %v531, 112
          %v534 = vpop.permute.xlu0 %533
          %v535 = vrot.slane %v534, 1
          %v536 = vsel %vm326, %v534, %v535
          %v538 = vadd.f32 %v528, %v536
          %s539 = sld [smem:[#allocation3 + $0xf]]
          %v540 = vstv %s539
          %v541 = vmul.f32 %v540, %v314
          %543 = vrot.lane.b32.xlu0 %v541, 96
          %v544 = vpop.permute.xlu0 %543
          %v545 = vrot.slane %v544, 1
          %v546 = vsel %vm337, %v544, %v545
          %v548 = vadd.f32 %v538, %v546
          %s549 = sld [smem:[#allocation3 + $0x16]]
          %v550 = vstv %s549
          %v551 = vmul.f32 %v550, %v314
          %553 = vrot.lane.b32.xlu0 %v551, 80
          %v554 = vpop.permute.xlu0 %553
          %v555 = vrot.slane %v554, 1
          %v556 = vsel %vm348, %v554, %v555
          %v558 = vadd.f32 %v548, %v556
          %s559 = sld [smem:[#allocation3 + $0x1d]]
          %v560 = vstv %s559
          %561 = vrot.lane.b32.xlu0 %v314, 114
          %v562 = vpop.permute.xlu0 %561
          %v563 = vrot.slane %v562, 1
          %v564 = vrot.slane %v562, 2
          %vm565 = vcmask 932864
          %v566 = vsel %vm565, %v563, %v564
          %v568 = vmul.f32 %v560, %v566
          %570 = vrot.lane.b32.xlu0 %v568, 78
          %v571 = vpop.permute.xlu0 %570
          %v572 = vrot.slane %v571, 7
          %vm573 = vcmask 637952
          %v574 = vsel %vm573, %v572, %v571
          %v576 = vadd.f32 %v558, %v574
          %s577 = sld [smem:[#allocation3 + $0x24]]
          %v578 = vstv %s577
          %579 = vrot.lane.b32.xlu0 %v314, 98
          %v580 = vpop.permute.xlu0 %579
          %v581 = vrot.slane %v580, 1
          %v582 = vrot.slane %v580, 2
          %vm583 = vcmask 801792
          %v584 = vsel %vm583, %v581, %v582
          %v586 = vmul.f32 %v578, %v584
          %588 = vrot.lane.b32.xlu0 %v586, 78
          %v589 = vpop.permute.xlu0 %588
          %v590 = vrot.slane %v589, 7
          %v591 = vsel %vm573, %v590, %v589
          %v593 = vadd.f32 %v576, %v591
          %s594 = sld [smem:[#allocation3 + $0x2b]]
          %v595 = vstv %s594
          %596 = vrot.lane.b32.xlu0 %v314, 82
          %v597 = vpop.permute.xlu0 %596
          %v598 = vrot.slane %v597, 1
          %v599 = vrot.slane %v597, 2
          %vm600 = vcmask 670720
          %v601 = vsel %vm600, %v598, %v599
          %v603 = vmul.f32 %v595, %v601
          %605 = vrot.lane.b32.xlu0 %v603, 78
          %v606 = vpop.permute.xlu0 %605
          %v607 = vrot.slane %v606, 7
          %v608 = vsel %vm573, %v607, %v606
          %v610 = vadd.f32 %v593, %v608
          %s611 = sld [smem:[#allocation3 + $0x32]]
          %v612 = vstv %s611
          %v613 = vmul.f32 %v612, %v405
          %v614 = vadd.f32 %v610, %v613
          %s615 = sld [smem:[#allocation3 + $0x39]]
          %v616 = vstv %s615
          %v617 = vmul.f32 %v616, %v405
          %619 = vrot.lane.b32.xlu0 %v617, 112
          %v620 = vpop.permute.xlu0 %619
          %v621 = vrot.slane %v620, 1
          %v622 = vsel %vm326, %v620, %v621
          %v624 = vadd.f32 %v614, %v622
          %s625 = sld [smem:[#allocation3 + $0x40]]
          %v626 = vstv %s625
          %v627 = vmul.f32 %v626, %v405
          %629 = vrot.lane.b32.xlu0 %v627, 96
          %v630 = vpop.permute.xlu0 %629
          %v631 = vrot.slane %v630, 1
          %v632 = vsel %vm337, %v630, %v631
          %v634 = vadd.f32 %v624, %v632
          %s635 = sld [smem:[#allocation3 + $0x47]]
          %v636 = vstv %s635
          %v637 = vmul.f32 %v636, %v405
          %639 = vrot.lane.b32.xlu0 %v637, 80
          %v640 = vpop.permute.xlu0 %639
          %v641 = vrot.slane %v640, 1
          %v642 = vsel %vm348, %v640, %v641
          %v644 = vadd.f32 %v634, %v642
          %s645 = sld [smem:[#allocation3 + $0x4e]]
          %v646 = vstv %s645
          %647 = vrot.lane.b32.xlu0 %v405, 114
          %v648 = vpop.permute.xlu0 %647
          %v649 = vrot.slane %v648, 1
          %v650 = vrot.slane %v648, 2
          %v651 = vsel %vm565, %v649, %v650
          %v653 = vmul.f32 %v646, %v651
          %655 = vrot.lane.b32.xlu0 %v653, 78
          %v656 = vpop.permute.xlu0 %655
          %v657 = vrot.slane %v656, 7
          %v658 = vsel %vm573, %v657, %v656
          %v660 = vadd.f32 %v644, %v658
          %s661 = sld [smem:[#allocation3 + $0x55]]
          %v662 = vstv %s661
          %663 = vrot.lane.b32.xlu0 %v405, 98
          %v664 = vpop.permute.xlu0 %663
          %v665 = vrot.slane %v664, 1
          %v666 = vrot.slane %v664, 2
          %v667 = vsel %vm583, %v665, %v666
          %v669 = vmul.f32 %v662, %v667
          %671 = vrot.lane.b32.xlu0 %v669, 78
          %v672 = vpop.permute.xlu0 %671
          %v673 = vrot.slane %v672, 7
          %v674 = vsel %vm573, %v673, %v672
          %v676 = vadd.f32 %v660, %v674
          %s677 = sld [smem:[#allocation3 + $0x5c]]
          %v678 = vstv %s677
          %679 = vrot.lane.b32.xlu0 %v405, 82
          %v680 = vpop.permute.xlu0 %679
          %v681 = vrot.slane %v680, 1
          %v682 = vrot.slane %v680, 2
          %v683 = vsel %vm600, %v681, %v682
          %v685 = vmul.f32 %v678, %v683
          %687 = vrot.lane.b32.xlu0 %v685, 78
          %v688 = vpop.permute.xlu0 %687
          %v689 = vrot.slane %v688, 7
          %v690 = vsel %vm573, %v689, %v688
          %v692 = vadd.f32 %v676, %v690
          %v694 = vlaneseq
          %v695 = vshrl.u32 %v694, 7
          %v696 = vsub.s32 0, %v695
          %v697 = vrot.slane %v692, %v696
          %v698 = vlaneseq
          %v699 = vshrl.u32 %v698, 7
          %v700 = vsub.s32 1, %v699
          %v701 = vrot.slane %v692, %v700
          %v702 = vlaneseq
          %v703 = vshrl.u32 %v702, 7
          %v704 = vsub.s32 2, %v703
          %v705 = vrot.slane %v692, %v704
          %706 = vrot.lane.b32.xlu0 %v697, 50
          %v707 = vpop.permute.xlu0 %706
          %708 = vrot.lane.b32.xlu0 %v701, 50
          %v709 = vpop.permute.xlu0 %708
          %710 = vrot.lane.b32.xlu0 %v705, 50
          %v711 = vpop.permute.xlu0 %710
          %vm712 = vcmask 408576
          %v713 = vsel %vm712, %v707, %v709
          %v714 = vsel %vm712, %v709, %v711
          %v717 = vsel %vm523, %v713, 0.0
          %v718 = vsel %vm524, %v714, 0.0
          %v719 = vadd.f32 %v515, %v717
          %v720 = vadd.f32 %v516, %v718
          %v721 = vadd.s32 %v304, 4294967295
          %v722 = vadd.s32 %v305, 4294967295
          %vm723 = vcmp.ge.s32.totalorder %v721, 0
          %vm724 = vcmp.ge.s32.totalorder %v722, 0
          %vm725 = vcmp.lt.s32.totalorder %v721, 16
          %vm726 = vcmp.lt.s32.totalorder %v722, 16
          %vm727 = vmand %vm723, %vm725
          %vm728 = vmand %vm724, %vm726
          %s729 = sld [smem:[#allocation3 + $0x2]]
          %v730 = vstv %s729
          %v731 = vmul.f32 %v730, %v314
          %v732 = vadd.f32 %v731, 0.0
          %s733 = sld [smem:[#allocation3 + $0x9]]
          %v734 = vstv %s733
          %v735 = vmul.f32 %v734, %v314
          %737 = vrot.lane.b32.xlu0 %v735, 112
          %v738 = vpop.permute.xlu0 %737
          %v739 = vrot.slane %v738, 1
          %v740 = vsel %vm326, %v738, %v739
          %v742 = vadd.f32 %v732, %v740
          %s743 = sld [smem:[#allocation3 + $0x10]]
          %v744 = vstv %s743
          %v745 = vmul.f32 %v744, %v314
          %747 = vrot.lane.b32.xlu0 %v745, 96
          %v748 = vpop.permute.xlu0 %747
          %v749 = vrot.slane %v748, 1
          %v750 = vsel %vm337, %v748, %v749
          %v752 = vadd.f32 %v742, %v750
          %s753 = sld [smem:[#allocation3 + $0x17]]
          %v754 = vstv %s753
          %v755 = vmul.f32 %v754, %v314
          %757 = vrot.lane.b32.xlu0 %v755, 80
          %v758 = vpop.permute.xlu0 %757
          %v759 = vrot.slane %v758, 1
          %v760 = vsel %vm348, %v758, %v759
          %v762 = vadd.f32 %v752, %v760
          %s763 = sld [smem:[#allocation3 + $0x1e]]
          %v764 = vstv %s763
          %765 = vrot.lane.b32.xlu0 %v314, 113
          %v766 = vpop.permute.xlu0 %765
          %v767 = vrot.slane %v766, 1
          %v768 = vrot.slane %v766, 2
          %vm769 = vcmask 924672
          %v770 = vsel %vm769, %v767, %v768
          %v772 = vmul.f32 %v764, %v770
          %774 = vrot.lane.b32.xlu0 %v772, 79
          %v775 = vpop.permute.xlu0 %774
          %v776 = vrot.slane %v775, 7
          %vm777 = vcmask 646144
          %v778 = vsel %vm777, %v776, %v775
          %v780 = vadd.f32 %v762, %v778
          %s781 = sld [smem:[#allocation3 + $0x25]]
          %v782 = vstv %s781
          %783 = vrot.lane.b32.xlu0 %v314, 97
          %v784 = vpop.permute.xlu0 %783
          %v785 = vrot.slane %v784, 1
          %v786 = vrot.slane %v784, 2
          %vm787 = vcmask 793600
          %v788 = vsel %vm787, %v785, %v786
          %v790 = vmul.f32 %v782, %v788
          %792 = vrot.lane.b32.xlu0 %v790, 79
          %v793 = vpop.permute.xlu0 %792
          %v794 = vrot.slane %v793, 7
          %v795 = vsel %vm777, %v794, %v793
          %v797 = vadd.f32 %v780, %v795
          %s798 = sld [smem:[#allocation3 + $0x2c]]
          %v799 = vstv %s798
          %800 = vrot.lane.b32.xlu0 %v314, 81
          %v801 = vpop.permute.xlu0 %800
          %v802 = vrot.slane %v801, 1
          %v803 = vrot.slane %v801, 2
          %vm804 = vcmask 662528
          %v805 = vsel %vm804, %v802, %v803
          %v807 = vmul.f32 %v799, %v805
          %809 = vrot.lane.b32.xlu0 %v807, 79
          %v810 = vpop.permute.xlu0 %809
          %v811 = vrot.slane %v810, 7
          %v812 = vsel %vm777, %v811, %v810
          %v814 = vadd.f32 %v797, %v812
          %s815 = sld [smem:[#allocation3 + $0x33]]
          %v816 = vstv %s815
          %v817 = vmul.f32 %v816, %v405
          %v818 = vadd.f32 %v814, %v817
          %s819 = sld [smem:[#allocation3 + $0x3a]]
          %v820 = vstv %s819
          %v821 = vmul.f32 %v820, %v405
          %823 = vrot.lane.b32.xlu0 %v821, 112
          %v824 = vpop.permute.xlu0 %823
          %v825 = vrot.slane %v824, 1
          %v826 = vsel %vm326, %v824, %v825
          %v828 = vadd.f32 %v818, %v826
          %s829 = sld [smem:[#allocation3 + $0x41]]
          %v830 = vstv %s829
          %v831 = vmul.f32 %v830, %v405
          %833 = vrot.lane.b32.xlu0 %v831, 96
          %v834 = vpop.permute.xlu0 %833
          %v835 = vrot.slane %v834, 1
          %v836 = vsel %vm337, %v834, %v835
          %v838 = vadd.f32 %v828, %v836
          %s839 = sld [smem:[#allocation3 + $0x48]]
          %v840 = vstv %s839
          %v841 = vmul.f32 %v840, %v405
          %843 = vrot.lane.b32.xlu0 %v841, 80
          %v844 = vpop.permute.xlu0 %843
          %v845 = vrot.slane %v844, 1
          %v846 = vsel %vm348, %v844, %v845
          %v848 = vadd.f32 %v838, %v846
          %s849 = sld [smem:[#allocation3 + $0x4f]]
          %v850 = vstv %s849
          %851 = vrot.lane.b32.xlu0 %v405, 113
          %v852 = vpop.permute.xlu0 %851
          %v853 = vrot.slane %v852, 1
          %v854 = vrot.slane %v852, 2
          %v855 = vsel %vm769, %v853, %v854
          %v857 = vmul.f32 %v850, %v855
          %859 = vrot.lane.b32.xlu0 %v857, 79
          %v860 = vpop.permute.xlu0 %859
          %v861 = vrot.slane %v860, 7
          %v862 = vsel %vm777, %v861, %v860
          %v864 = vadd.f32 %v848, %v862
          %s865 = sld [smem:[#allocation3 + $0x56]]
          %v866 = vstv %s865
          %867 = vrot.lane.b32.xlu0 %v405, 97
          %v868 = vpop.permute.xlu0 %867
          %v869 = vrot.slane %v868, 1
          %v870 = vrot.slane %v868, 2
          %v871 = vsel %vm787, %v869, %v870
          %v873 = vmul.f32 %v866, %v871
          %875 = vrot.lane.b32.xlu0 %v873, 79
          %v876 = vpop.permute.xlu0 %875
          %v877 = vrot.slane %v876, 7
          %v878 = vsel %vm777, %v877, %v876
          %v880 = vadd.f32 %v864, %v878
          %s881 = sld [smem:[#allocation3 + $0x5d]]
          %v882 = vstv %s881
          %883 = vrot.lane.b32.xlu0 %v405, 81
          %v884 = vpop.permute.xlu0 %883
          %v885 = vrot.slane %v884, 1
          %v886 = vrot.slane %v884, 2
          %v887 = vsel %vm804, %v885, %v886
          %v889 = vmul.f32 %v882, %v887
          %891 = vrot.lane.b32.xlu0 %v889, 79
          %v892 = vpop.permute.xlu0 %891
          %v893 = vrot.slane %v892, 7
          %v894 = vsel %vm777, %v893, %v892
          %v896 = vadd.f32 %v880, %v894
          %v898 = vlaneseq
          %v899 = vshrl.u32 %v898, 7
          %v900 = vsub.s32 0, %v899
          %v901 = vrot.slane %v896, %v900
          %v902 = vlaneseq
          %v903 = vshrl.u32 %v902, 7
          %v904 = vsub.s32 1, %v903
          %v905 = vrot.slane %v896, %v904
          %v906 = vlaneseq
          %v907 = vshrl.u32 %v906, 7
          %v908 = vsub.s32 2, %v907
          %v909 = vrot.slane %v896, %v908
          %910 = vrot.lane.b32.xlu0 %v901, 49
          %v911 = vpop.permute.xlu0 %910
          %912 = vrot.lane.b32.xlu0 %v905, 49
          %v913 = vpop.permute.xlu0 %912
          %914 = vrot.lane.b32.xlu0 %v909, 49
          %v915 = vpop.permute.xlu0 %914
          %vm916 = vcmask 400384
          %v917 = vsel %vm916, %v911, %v913
          %v918 = vsel %vm916, %v913, %v915
          %v921 = vsel %vm727, %v917, 0.0
          %v922 = vsel %vm728, %v918, 0.0
          %v923 = vadd.f32 %v719, %v921
          %v924 = vadd.f32 %v720, %v922
          %vm925 = vcmp.ge.s32.totalorder %v304, 0
          %vm926 = vcmp.ge.s32.totalorder %v305, 0
          %vm927 = vcmp.lt.s32.totalorder %v304, 16
          %vm928 = vcmp.lt.s32.totalorder %v305, 16
          %vm929 = vmand %vm925, %vm927
          %vm930 = vmand %vm926, %vm928
          %s931 = sld [smem:[#allocation3 + $0x3]]
          %v932 = vstv %s931
          %v933 = vmul.f32 %v932, %v314
          %v934 = vadd.f32 %v933, 0.0
          %s935 = sld [smem:[#allocation3 + $0xa]]
          %v936 = vstv %s935
          %v937 = vmul.f32 %v936, %v314
          %939 = vrot.lane.b32.xlu0 %v937, 112
          %v940 = vpop.permute.xlu0 %939
          %v941 = vrot.slane %v940, 1
          %v942 = vsel %vm326, %v940, %v941
          %v944 = vadd.f32 %v934, %v942
          %s945 = sld [smem:[#allocation3 + $0x11]]
          %v946 = vstv %s945
          %v947 = vmul.f32 %v946, %v314
          %949 = vrot.lane.b32.xlu0 %v947, 96
          %v950 = vpop.permute.xlu0 %949
          %v951 = vrot.slane %v950, 1
          %v952 = vsel %vm337, %v950, %v951
          %v954 = vadd.f32 %v944, %v952
          %s955 = sld [smem:[#allocation3 + $0x18]]
          %v956 = vstv %s955
          %v957 = vrot.slane %v314, 1
          %v959 = vmul.f32 %v956, %v957
          %961 = vrot.lane.b32.xlu0 %v959, 80
          %v962 = vpop.permute.xlu0 %961
          %v963 = vrot.slane %v962, 7
          %v964 = vsel %vm348, %v963, %v962
          %v966 = vadd.f32 %v954, %v964
          %s967 = sld [smem:[#allocation3 + $0x1f]]
          %v968 = vstv %s967
          %969 = vrot.lane.b32.xlu0 %v314, 112
          %v970 = vpop.permute.xlu0 %969
          %v971 = vrot.slane %v970, 1
          %v972 = vrot.slane %v970, 2
          %v973 = vsel %vm326, %v971, %v972
          %v975 = vmul.f32 %v968, %v973
          %977 = vrot.lane.b32.xlu0 %v975, 80
          %v978 = vpop.permute.xlu0 %977
          %v979 = vrot.slane %v978, 7
          %v980 = vsel %vm348, %v979, %v978
          %v982 = vadd.f32 %v966, %v980
          %s983 = sld [smem:[#allocation3 + $0x26]]
          %v984 = vstv %s983
          %985 = vrot.lane.b32.xlu0 %v314, 96
          %v986 = vpop.permute.xlu0 %985
          %v987 = vrot.slane %v986, 1
          %v988 = vrot.slane %v986, 2
          %v989 = vsel %vm337, %v987, %v988
          %v991 = vmul.f32 %v984, %v989
          %993 = vrot.lane.b32.xlu0 %v991, 80
          %v994 = vpop.permute.xlu0 %993
          %v995 = vrot.slane %v994, 7
          %v996 = vsel %vm348, %v995, %v994
          %v998 = vadd.f32 %v982, %v996
          %s999 = sld [smem:[#allocation3 + $0x2d]]
          %v1000 = vstv %s999
          %1001 = vrot.lane.b32.xlu0 %v314, 80
          %v1002 = vpop.permute.xlu0 %1001
          %v1003 = vrot.slane %v1002, 1
          %v1004 = vrot.slane %v1002, 2
          %v1005 = vsel %vm348, %v1003, %v1004
          %v1007 = vmul.f32 %v1000, %v1005
          %1009 = vrot.lane.b32.xlu0 %v1007, 80
          %v1010 = vpop.permute.xlu0 %1009
          %v1011 = vrot.slane %v1010, 7
          %v1012 = vsel %vm348, %v1011, %v1010
          %v1014 = vadd.f32 %v998, %v1012
          %s1015 = sld [smem:[#allocation3 + $0x34]]
          %v1016 = vstv %s1015
          %v1017 = vmul.f32 %v1016, %v405
          %v1018 = vadd.f32 %v1014, %v1017
          %s1019 = sld [smem:[#allocation3 + $0x3b]]
          %v1020 = vstv %s1019
          %v1021 = vmul.f32 %v1020, %v405
          %1023 = vrot.lane.b32.xlu0 %v1021, 112
          %v1024 = vpop.permute.xlu0 %1023
          %v1025 = vrot.slane %v1024, 1
          %v1026 = vsel %vm326, %v1024, %v1025
          %v1028 = vadd.f32 %v1018, %v1026
          %s1029 = sld [smem:[#allocation3 + $0x42]]
          %v1030 = vstv %s1029
          %v1031 = vmul.f32 %v1030, %v405
          %1033 = vrot.lane.b32.xlu0 %v1031, 96
          %v1034 = vpop.permute.xlu0 %1033
          %v1035 = vrot.slane %v1034, 1
          %v1036 = vsel %vm337, %v1034, %v1035
          %v1038 = vadd.f32 %v1028, %v1036
          %s1039 = sld [smem:[#allocation3 + $0x49]]
          %v1040 = vstv %s1039
          %v1041 = vrot.slane %v405, 1
          %v1043 = vmul.f32 %v1040, %v1041
          %1045 = vrot.lane.b32.xlu0 %v1043, 80
          %v1046 = vpop.permute.xlu0 %1045
          %v1047 = vrot.slane %v1046, 7
          %v1048 = vsel %vm348, %v1047, %v1046
          %v1050 = vadd.f32 %v1038, %v1048
          %s1051 = sld [smem:[#allocation3 + $0x50]]
          %v1052 = vstv %s1051
          %1053 = vrot.lane.b32.xlu0 %v405, 112
          %v1054 = vpop.permute.xlu0 %1053
          %v1055 = vrot.slane %v1054, 1
          %v1056 = vrot.slane %v1054, 2
          %v1057 = vsel %vm326, %v1055, %v1056
          %v1059 = vmul.f32 %v1052, %v1057
          %1061 = vrot.lane.b32.xlu0 %v1059, 80
          %v1062 = vpop.permute.xlu0 %1061
          %v1063 = vrot.slane %v1062, 7
          %v1064 = vsel %vm348, %v1063, %v1062
          %v1066 = vadd.f32 %v1050, %v1064
          %s1067 = sld [smem:[#allocation3 + $0x57]]
          %v1068 = vstv %s1067
          %1069 = vrot.lane.b32.xlu0 %v405, 96
          %v1070 = vpop.permute.xlu0 %1069
          %v1071 = vrot.slane %v1070, 1
          %v1072 = vrot.slane %v1070, 2
          %v1073 = vsel %vm337, %v1071, %v1072
          %v1075 = vmul.f32 %v1068, %v1073
          %1077 = vrot.lane.b32.xlu0 %v1075, 80
          %v1078 = vpop.permute.xlu0 %1077
          %v1079 = vrot.slane %v1078, 7
          %v1080 = vsel %vm348, %v1079, %v1078
          %v1082 = vadd.f32 %v1066, %v1080
          %s1083 = sld [smem:[#allocation3 + $0x5e]]
          %v1084 = vstv %s1083
          %1085 = vrot.lane.b32.xlu0 %v405, 80
          %v1086 = vpop.permute.xlu0 %1085
          %v1087 = vrot.slane %v1086, 1
          %v1088 = vrot.slane %v1086, 2
          %v1089 = vsel %vm348, %v1087, %v1088
          %v1091 = vmul.f32 %v1084, %v1089
          %1093 = vrot.lane.b32.xlu0 %v1091, 80
          %v1094 = vpop.permute.xlu0 %1093
          %v1095 = vrot.slane %v1094, 7
          %v1096 = vsel %vm348, %v1095, %v1094
          %v1098 = vadd.f32 %v1082, %v1096
          %v1100 = vlaneseq
          %v1101 = vshrl.u32 %v1100, 7
          %v1102 = vsub.s32 0, %v1101
          %v1103 = vrot.slane %v1098, %v1102
          %v1104 = vlaneseq
          %v1105 = vshrl.u32 %v1104, 7
          %v1106 = vsub.s32 1, %v1105
          %v1107 = vrot.slane %v1098, %v1106
          %v1108 = vlaneseq
          %v1109 = vshrl.u32 %v1108, 7
          %v1110 = vsub.s32 2, %v1109
          %v1111 = vrot.slane %v1098, %v1110
          %1112 = vrot.lane.b32.xlu0 %v1103, 48
          %v1113 = vpop.permute.xlu0 %1112
          %1114 = vrot.lane.b32.xlu0 %v1107, 48
          %v1115 = vpop.permute.xlu0 %1114
          %1116 = vrot.lane.b32.xlu0 %v1111, 48
          %v1117 = vpop.permute.xlu0 %1116
          %vm1118 = vcmask 392192
          %v1119 = vsel %vm1118, %v1113, %v1115
          %v1120 = vsel %vm1118, %v1115, %v1117
          %v1123 = vsel %vm929, %v1119, 0.0
          %v1124 = vsel %vm930, %v1120, 0.0
          %v1125 = vadd.f32 %v923, %v1123
          %v1126 = vadd.f32 %v924, %v1124
          %v1127 = vadd.s32 %v304, 1
          %v1128 = vadd.s32 %v305, 1
          %vm1129 = vcmp.ge.s32.totalorder %v1127, 0
          %vm1130 = vcmp.ge.s32.totalorder %v1128, 0
          %vm1131 = vcmp.lt.s32.totalorder %v1127, 16
          %vm1132 = vcmp.lt.s32.totalorder %v1128, 16
          %vm1133 = vmand %vm1129, %vm1131
          %vm1134 = vmand %vm1130, %vm1132
          %s1135 = sld [smem:[#allocation3 + $0x4]]
          %v1136 = vstv %s1135
          %v1137 = vmul.f32 %v1136, %v314
          %v1138 = vadd.f32 %v1137, 0.0
          %s1139 = sld [smem:[#allocation3 + $0xb]]
          %v1140 = vstv %s1139
          %v1141 = vmul.f32 %v1140, %v314
          %1143 = vrot.lane.b32.xlu0 %v1141, 112
          %v1144 = vpop.permute.xlu0 %1143
          %v1145 = vrot.slane %v1144, 1
          %v1146 = vsel %vm326, %v1144, %v1145
          %v1148 = vadd.f32 %v1138, %v1146
          %s1149 = sld [smem:[#allocation3 + $0x12]]
          %v1150 = vstv %s1149
          %v1151 = vmul.f32 %v1150, %v314
          %1153 = vrot.lane.b32.xlu0 %v1151, 96
          %v1154 = vpop.permute.xlu0 %1153
          %v1155 = vrot.slane %v1154, 1
          %v1156 = vsel %vm337, %v1154, %v1155
          %v1158 = vadd.f32 %v1148, %v1156
          %s1159 = sld [smem:[#allocation3 + $0x19]]
          %v1160 = vstv %s1159
          %1161 = vrot.lane.b32.xlu0 %v314, 127
          %v1162 = vpop.permute.xlu0 %1161
          %v1163 = vrot.slane %v1162, 1
          %v1164 = vrot.slane %v1162, 2
          %vm1165 = vcmask 1039360
          %v1166 = vsel %vm1165, %v1163, %v1164
          %v1168 = vmul.f32 %v1160, %v1166
          %1170 = vrot.lane.b32.xlu0 %v1168, 81
          %v1171 = vpop.permute.xlu0 %1170
          %v1172 = vrot.slane %v1171, 7
          %v1173 = vsel %vm804, %v1172, %v1171
          %v1175 = vadd.f32 %v1158, %v1173
          %s1176 = sld [smem:[#allocation3 + $0x20]]
          %v1177 = vstv %s1176
          %1178 = vrot.lane.b32.xlu0 %v314, 111
          %v1179 = vpop.permute.xlu0 %1178
          %v1180 = vrot.slane %v1179, 1
          %v1181 = vrot.slane %v1179, 2
          %vm1182 = vcmask 908288
          %v1183 = vsel %vm1182, %v1180, %v1181
          %v1185 = vmul.f32 %v1177, %v1183
          %1187 = vrot.lane.b32.xlu0 %v1185, 81
          %v1188 = vpop.permute.xlu0 %1187
          %v1189 = vrot.slane %v1188, 7
          %v1190 = vsel %vm804, %v1189, %v1188
          %v1192 = vadd.f32 %v1175, %v1190
          %s1193 = sld [smem:[#allocation3 + $0x27]]
          %v1194 = vstv %s1193
          %1195 = vrot.lane.b32.xlu0 %v314, 95
          %v1196 = vpop.permute.xlu0 %1195
          %v1197 = vrot.slane %v1196, 1
          %v1198 = vrot.slane %v1196, 2
          %vm1199 = vcmask 777216
          %v1200 = vsel %vm1199, %v1197, %v1198
          %v1202 = vmul.f32 %v1194, %v1200
          %1204 = vrot.lane.b32.xlu0 %v1202, 81
          %v1205 = vpop.permute.xlu0 %1204
          %v1206 = vrot.slane %v1205, 7
          %v1207 = vsel %vm804, %v1206, %v1205
          %v1209 = vadd.f32 %v1192, %v1207
          %s1210 = sld [smem:[#allocation3 + $0x2e]]
          %v1211 = vstv %s1210
          %1212 = vrot.lane.b32.xlu0 %v314, 79
          %v1213 = vpop.permute.xlu0 %1212
          %v1214 = vrot.slane %v1213, 1
          %v1215 = vrot.slane %v1213, 2
          %v1216 = vsel %vm777, %v1214, %v1215
          %v1218 = vmul.f32 %v1211, %v1216
          %1220 = vrot.lane.b32.xlu0 %v1218, 81
          %v1221 = vpop.permute.xlu0 %1220
          %v1222 = vrot.slane %v1221, 7
          %v1223 = vsel %vm804, %v1222, %v1221
          %v1225 = vadd.f32 %v1209, %v1223
          %s1226 = sld [smem:[#allocation3 + $0x35]]
          %v1227 = vstv %s1226
          %v1228 = vmul.f32 %v1227, %v405
          %v1229 = vadd.f32 %v1225, %v1228
          %s1230 = sld [smem:[#allocation3 + $0x3c]]
          %v1231 = vstv %s1230
          %v1232 = vmul.f32 %v1231, %v405
          %1234 = vrot.lane.b32.xlu0 %v1232, 112
          %v1235 = vpop.permute.xlu0 %1234
          %v1236 = vrot.slane %v1235, 1
          %v1237 = vsel %vm326, %v1235, %v1236
          %v1239 = vadd.f32 %v1229, %v1237
          %s1240 = sld [smem:[#allocation3 + $0x43]]
          %v1241 = vstv %s1240
          %v1242 = vmul.f32 %v1241, %v405
          %1244 = vrot.lane.b32.xlu0 %v1242, 96
          %v1245 = vpop.permute.xlu0 %1244
          %v1246 = vrot.slane %v1245, 1
          %v1247 = vsel %vm337, %v1245, %v1246
          %v1249 = vadd.f32 %v1239, %v1247
          %s1250 = sld [smem:[#allocation3 + $0x4a]]
          %v1251 = vstv %s1250
          %1252 = vrot.lane.b32.xlu0 %v405, 127
          %v1253 = vpop.permute.xlu0 %1252
          %v1254 = vrot.slane %v1253, 1
          %v1255 = vrot.slane %v1253, 2
          %v1256 = vsel %vm1165, %v1254, %v1255
          %v1258 = vmul.f32 %v1251, %v1256
          %1260 = vrot.lane.b32.xlu0 %v1258, 81
          %v1261 = vpop.permute.xlu0 %1260
          %v1262 = vrot.slane %v1261, 7
          %v1263 = vsel %vm804, %v1262, %v1261
          %v1265 = vadd.f32 %v1249, %v1263
          %s1266 = sld [smem:[#allocation3 + $0x51]]
          %v1267 = vstv %s1266
          %1268 = vrot.lane.b32.xlu0 %v405, 111
          %v1269 = vpop.permute.xlu0 %1268
          %v1270 = vrot.slane %v1269, 1
          %v1271 = vrot.slane %v1269, 2
          %v1272 = vsel %vm1182, %v1270, %v1271
          %v1274 = vmul.f32 %v1267, %v1272
          %1276 = vrot.lane.b32.xlu0 %v1274, 81
          %v1277 = vpop.permute.xlu0 %1276
          %v1278 = vrot.slane %v1277, 7
          %v1279 = vsel %vm804, %v1278, %v1277
          %v1281 = vadd.f32 %v1265, %v1279
          %s1282 = sld [smem:[#allocation3 + $0x58]]
          %v1283 = vstv %s1282
          %1284 = vrot.lane.b32.xlu0 %v405, 95
          %v1285 = vpop.permute.xlu0 %1284
          %v1286 = vrot.slane %v1285, 1
          %v1287 = vrot.slane %v1285, 2
          %v1288 = vsel %vm1199, %v1286, %v1287
          %v1290 = vmul.f32 %v1283, %v1288
          %1292 = vrot.lane.b32.xlu0 %v1290, 81
          %v1293 = vpop.permute.xlu0 %1292
          %v1294 = vrot.slane %v1293, 7
          %v1295 = vsel %vm804, %v1294, %v1293
          %v1297 = vadd.f32 %v1281, %v1295
          %s1298 = sld [smem:[#allocation3 + $0x5f]]
          %v1299 = vstv %s1298
          %1300 = vrot.lane.b32.xlu0 %v405, 79
          %v1301 = vpop.permute.xlu0 %1300
          %v1302 = vrot.slane %v1301, 1
          %v1303 = vrot.slane %v1301, 2
          %v1304 = vsel %vm777, %v1302, %v1303
          %v1306 = vmul.f32 %v1299, %v1304
          %1308 = vrot.lane.b32.xlu0 %v1306, 81
          %v1309 = vpop.permute.xlu0 %1308
          %v1310 = vrot.slane %v1309, 7
          %v1311 = vsel %vm804, %v1310, %v1309
          %v1313 = vadd.f32 %v1297, %v1311
          %v1315 = vlaneseq
          %v1316 = vshrl.u32 %v1315, 7
          %v1317 = vsub.s32 0, %v1316
          %v1318 = vrot.slane %v1313, %v1317
          %v1319 = vlaneseq
          %v1320 = vshrl.u32 %v1319, 7
          %v1321 = vsub.s32 1, %v1320
          %v1322 = vrot.slane %v1313, %v1321
          %v1323 = vlaneseq
          %v1324 = vshrl.u32 %v1323, 7
          %v1325 = vsub.s32 2, %v1324
          %v1326 = vrot.slane %v1313, %v1325
          %1327 = vrot.lane.b32.xlu0 %v1318, 47
          %v1328 = vpop.permute.xlu0 %1327
          %1329 = vrot.lane.b32.xlu0 %v1322, 47
          %v1330 = vpop.permute.xlu0 %1329
          %1331 = vrot.lane.b32.xlu0 %v1326, 47
          %v1332 = vpop.permute.xlu0 %1331
          %vm1333 = vcmask 384000
          %v1334 = vsel %vm1333, %v1328, %v1330
          %v1335 = vsel %vm1333, %v1330, %v1332
          %v1338 = vsel %vm1133, %v1334, 0.0
          %v1339 = vsel %vm1134, %v1335, 0.0
          %v1340 = vadd.f32 %v1125, %v1338
          %v1341 = vadd.f32 %v1126, %v1339
          %v1342 = vadd.s32 %v304, 2
          %v1343 = vadd.s32 %v305, 2
          %vm1344 = vcmp.ge.s32.totalorder %v1342, 0
          %vm1345 = vcmp.ge.s32.totalorder %v1343, 0
          %vm1346 = vcmp.lt.s32.totalorder %v1342, 16
          %vm1347 = vcmp.lt.s32.totalorder %v1343, 16
          %vm1348 = vmand %vm1344, %vm1346
          %vm1349 = vmand %vm1345, %vm1347
          %s1350 = sld [smem:[#allocation3 + $0x5]]
          %v1351 = vstv %s1350
          %v1352 = vmul.f32 %v1351, %v314
          %v1353 = vadd.f32 %v1352, 0.0
          %s1354 = sld [smem:[#allocation3 + $0xc]]
          %v1355 = vstv %s1354
          %v1356 = vmul.f32 %v1355, %v314
          %1358 = vrot.lane.b32.xlu0 %v1356, 112
          %v1359 = vpop.permute.xlu0 %1358
          %v1360 = vrot.slane %v1359, 1
          %v1361 = vsel %vm326, %v1359, %v1360
          %v1363 = vadd.f32 %v1353, %v1361
          %s1364 = sld [smem:[#allocation3 + $0x13]]
          %v1365 = vstv %s1364
          %v1366 = vmul.f32 %v1365, %v314
          %1368 = vrot.lane.b32.xlu0 %v1366, 96
          %v1369 = vpop.permute.xlu0 %1368
          %v1370 = vrot.slane %v1369, 1
          %v1371 = vsel %vm337, %v1369, %v1370
          %v1373 = vadd.f32 %v1363, %v1371
          %s1374 = sld [smem:[#allocation3 + $0x1a]]
          %v1375 = vstv %s1374
          %1376 = vrot.lane.b32.xlu0 %v314, 126
          %v1377 = vpop.permute.xlu0 %1376
          %v1378 = vrot.slane %v1377, 1
          %v1379 = vrot.slane %v1377, 2
          %vm1380 = vcmask 1031168
          %v1381 = vsel %vm1380, %v1378, %v1379
          %v1383 = vmul.f32 %v1375, %v1381
          %1385 = vrot.lane.b32.xlu0 %v1383, 82
          %v1386 = vpop.permute.xlu0 %1385
          %v1387 = vrot.slane %v1386, 7
          %v1388 = vsel %vm600, %v1387, %v1386
          %v1390 = vadd.f32 %v1373, %v1388
          %s1391 = sld [smem:[#allocation3 + $0x21]]
          %v1392 = vstv %s1391
          %1393 = vrot.lane.b32.xlu0 %v314, 110
          %v1394 = vpop.permute.xlu0 %1393
          %v1395 = vrot.slane %v1394, 1
          %v1396 = vrot.slane %v1394, 2
          %vm1397 = vcmask 900096
          %v1398 = vsel %vm1397, %v1395, %v1396
          %v1400 = vmul.f32 %v1392, %v1398
          %1402 = vrot.lane.b32.xlu0 %v1400, 82
          %v1403 = vpop.permute.xlu0 %1402
          %v1404 = vrot.slane %v1403, 7
          %v1405 = vsel %vm600, %v1404, %v1403
          %v1407 = vadd.f32 %v1390, %v1405
          %s1408 = sld [smem:[#allocation3 + $0x28]]
          %v1409 = vstv %s1408
          %1410 = vrot.lane.b32.xlu0 %v314, 94
          %v1411 = vpop.permute.xlu0 %1410
          %v1412 = vrot.slane %v1411, 1
          %v1413 = vrot.slane %v1411, 2
          %vm1414 = vcmask 769024
          %v1415 = vsel %vm1414, %v1412, %v1413
          %v1417 = vmul.f32 %v1409, %v1415
          %1419 = vrot.lane.b32.xlu0 %v1417, 82
          %v1420 = vpop.permute.xlu0 %1419
          %v1421 = vrot.slane %v1420, 7
          %v1422 = vsel %vm600, %v1421, %v1420
          %v1424 = vadd.f32 %v1407, %v1422
          %s1425 = sld [smem:[#allocation3 + $0x2f]]
          %v1426 = vstv %s1425
          %1427 = vrot.lane.b32.xlu0 %v314, 78
          %v1428 = vpop.permute.xlu0 %1427
          %v1429 = vrot.slane %v1428, 1
          %v1430 = vrot.slane %v1428, 2
          %v1431 = vsel %vm573, %v1429, %v1430
          %v1433 = vmul.f32 %v1426, %v1431
          %1435 = vrot.lane.b32.xlu0 %v1433, 82
          %v1436 = vpop.permute.xlu0 %1435
          %v1437 = vrot.slane %v1436, 7
          %v1438 = vsel %vm600, %v1437, %v1436
          %v1440 = vadd.f32 %v1424, %v1438
          %s1441 = sld [smem:[#allocation3 + $0x36]]
          %v1442 = vstv %s1441
          %v1443 = vmul.f32 %v1442, %v405
          %v1444 = vadd.f32 %v1440, %v1443
          %s1445 = sld [smem:[#allocation3 + $0x3d]]
          %v1446 = vstv %s1445
          %v1447 = vmul.f32 %v1446, %v405
          %1449 = vrot.lane.b32.xlu0 %v1447, 112
          %v1450 = vpop.permute.xlu0 %1449
          %v1451 = vrot.slane %v1450, 1
          %v1452 = vsel %vm326, %v1450, %v1451
          %v1454 = vadd.f32 %v1444, %v1452
          %s1455 = sld [smem:[#allocation3 + $0x44]]
          %v1456 = vstv %s1455
          %v1457 = vmul.f32 %v1456, %v405
          %1459 = vrot.lane.b32.xlu0 %v1457, 96
          %v1460 = vpop.permute.xlu0 %1459
          %v1461 = vrot.slane %v1460, 1
          %v1462 = vsel %vm337, %v1460, %v1461
          %v1464 = vadd.f32 %v1454, %v1462
          %s1465 = sld [smem:[#allocation3 + $0x4b]]
          %v1466 = vstv %s1465
          %1467 = vrot.lane.b32.xlu0 %v405, 126
          %v1468 = vpop.permute.xlu0 %1467
          %v1469 = vrot.slane %v1468, 1
          %v1470 = vrot.slane %v1468, 2
          %v1471 = vsel %vm1380, %v1469, %v1470
          %v1473 = vmul.f32 %v1466, %v1471
          %1475 = vrot.lane.b32.xlu0 %v1473, 82
          %v1476 = vpop.permute.xlu0 %1475
          %v1477 = vrot.slane %v1476, 7
          %v1478 = vsel %vm600, %v1477, %v1476
          %v1480 = vadd.f32 %v1464, %v1478
          %s1481 = sld [smem:[#allocation3 + $0x52]]
          %v1482 = vstv %s1481
          %1483 = vrot.lane.b32.xlu0 %v405, 110
          %v1484 = vpop.permute.xlu0 %1483
          %v1485 = vrot.slane %v1484, 1
          %v1486 = vrot.slane %v1484, 2
          %v1487 = vsel %vm1397, %v1485, %v1486
          %v1489 = vmul.f32 %v1482, %v1487
          %1491 = vrot.lane.b32.xlu0 %v1489, 82
          %v1492 = vpop.permute.xlu0 %1491
          %v1493 = vrot.slane %v1492, 7
          %v1494 = vsel %vm600, %v1493, %v1492
          %v1496 = vadd.f32 %v1480, %v1494
          %s1497 = sld [smem:[#allocation3 + $0x59]]
          %v1498 = vstv %s1497
          %1499 = vrot.lane.b32.xlu0 %v405, 94
          %v1500 = vpop.permute.xlu0 %1499
          %v1501 = vrot.slane %v1500, 1
          %v1502 = vrot.slane %v1500, 2
          %v1503 = vsel %vm1414, %v1501, %v1502
          %v1505 = vmul.f32 %v1498, %v1503
          %1507 = vrot.lane.b32.xlu0 %v1505, 82
          %v1508 = vpop.permute.xlu0 %1507
          %v1509 = vrot.slane %v1508, 7
          %v1510 = vsel %vm600, %v1509, %v1508
          %v1512 = vadd.f32 %v1496, %v1510
          %s1513 = sld [smem:[#allocation3 + $0x60]]
          %v1514 = vstv %s1513
          %1515 = vrot.lane.b32.xlu0 %v405, 78
          %v1516 = vpop.permute.xlu0 %1515
          %v1517 = vrot.slane %v1516, 1
          %v1518 = vrot.slane %v1516, 2
          %v1519 = vsel %vm573, %v1517, %v1518
          %v1521 = vmul.f32 %v1514, %v1519
          %1523 = vrot.lane.b32.xlu0 %v1521, 82
          %v1524 = vpop.permute.xlu0 %1523
          %v1525 = vrot.slane %v1524, 7
          %v1526 = vsel %vm600, %v1525, %v1524
          %v1528 = vadd.f32 %v1512, %v1526
          %v1530 = vlaneseq
          %v1531 = vshrl.u32 %v1530, 7
          %v1532 = vsub.s32 0, %v1531
          %v1533 = vrot.slane %v1528, %v1532
          %v1534 = vlaneseq
          %v1535 = vshrl.u32 %v1534, 7
          %v1536 = vsub.s32 1, %v1535
          %v1537 = vrot.slane %v1528, %v1536
          %v1538 = vlaneseq
          %v1539 = vshrl.u32 %v1538, 7
          %v1540 = vsub.s32 2, %v1539
          %v1541 = vrot.slane %v1528, %v1540
          %1542 = vrot.lane.b32.xlu0 %v1533, 46
          %v1543 = vpop.permute.xlu0 %1542
          %1544 = vrot.lane.b32.xlu0 %v1537, 46
          %v1545 = vpop.permute.xlu0 %1544
          %1546 = vrot.lane.b32.xlu0 %v1541, 46
          %v1547 = vpop.permute.xlu0 %1546
          %vm1548 = vcmask 375808
          %v1549 = vsel %vm1548, %v1543, %v1545
          %v1550 = vsel %vm1548, %v1545, %v1547
          %v1553 = vsel %vm1348, %v1549, 0.0
          %v1554 = vsel %vm1349, %v1550, 0.0
          %v1555 = vadd.f32 %v1340, %v1553
          %v1556 = vadd.f32 %v1341, %v1554
          %v1557 = vadd.s32 %v304, 3
          %v1558 = vadd.s32 %v305, 3
          %vm1559 = vcmp.ge.s32.totalorder %v1557, 0
          %vm1560 = vcmp.ge.s32.totalorder %v1558, 0
          %vm1561 = vcmp.lt.s32.totalorder %v1557, 16
          %vm1562 = vcmp.lt.s32.totalorder %v1558, 16
          %vm1563 = vmand %vm1559, %vm1561
          %vm1564 = vmand %vm1560, %vm1562
          %s1565 = sld [smem:[#allocation3 + $0x6]]
          %v1566 = vstv %s1565
          %v1567 = vmul.f32 %v1566, %v314
          %v1568 = vadd.f32 %v1567, 0.0
          %s1569 = sld [smem:[#allocation3 + $0xd]]
          %v1570 = vstv %s1569
          %v1571 = vmul.f32 %v1570, %v314
          %1573 = vrot.lane.b32.xlu0 %v1571, 112
          %v1574 = vpop.permute.xlu0 %1573
          %v1575 = vrot.slane %v1574, 1
          %v1576 = vsel %vm326, %v1574, %v1575
          %v1578 = vadd.f32 %v1568, %v1576
          %s1579 = sld [smem:[#allocation3 + $0x14]]
          %v1580 = vstv %s1579
          %v1581 = vmul.f32 %v1580, %v314
          %1583 = vrot.lane.b32.xlu0 %v1581, 96
          %v1584 = vpop.permute.xlu0 %1583
          %v1585 = vrot.slane %v1584, 1
          %v1586 = vsel %vm337, %v1584, %v1585
          %v1588 = vadd.f32 %v1578, %v1586
          %s1589 = sld [smem:[#allocation3 + $0x1b]]
          %v1590 = vstv %s1589
          %1591 = vrot.lane.b32.xlu0 %v314, 125
          %v1592 = vpop.permute.xlu0 %1591
          %v1593 = vrot.slane %v1592, 1
          %v1594 = vrot.slane %v1592, 2
          %vm1595 = vcmask 1022976
          %v1596 = vsel %vm1595, %v1593, %v1594
          %v1598 = vmul.f32 %v1590, %v1596
          %1600 = vrot.lane.b32.xlu0 %v1598, 83
          %v1601 = vpop.permute.xlu0 %1600
          %v1602 = vrot.slane %v1601, 7
          %v1603 = vsel %vm394, %v1602, %v1601
          %v1605 = vadd.f32 %v1588, %v1603
          %s1606 = sld [smem:[#allocation3 + $0x22]]
          %v1607 = vstv %s1606
          %1608 = vrot.lane.b32.xlu0 %v314, 109
          %v1609 = vpop.permute.xlu0 %1608
          %v1610 = vrot.slane %v1609, 1
          %v1611 = vrot.slane %v1609, 2
          %vm1612 = vcmask 891904
          %v1613 = vsel %vm1612, %v1610, %v1611
          %v1615 = vmul.f32 %v1607, %v1613
          %1617 = vrot.lane.b32.xlu0 %v1615, 83
          %v1618 = vpop.permute.xlu0 %1617
          %v1619 = vrot.slane %v1618, 7
          %v1620 = vsel %vm394, %v1619, %v1618
          %v1622 = vadd.f32 %v1605, %v1620
          %s1623 = sld [smem:[#allocation3 + $0x29]]
          %v1624 = vstv %s1623
          %1625 = vrot.lane.b32.xlu0 %v314, 93
          %v1626 = vpop.permute.xlu0 %1625
          %v1627 = vrot.slane %v1626, 1
          %v1628 = vrot.slane %v1626, 2
          %vm1629 = vcmask 760832
          %v1630 = vsel %vm1629, %v1627, %v1628
          %v1632 = vmul.f32 %v1624, %v1630
          %1634 = vrot.lane.b32.xlu0 %v1632, 83
          %v1635 = vpop.permute.xlu0 %1634
          %v1636 = vrot.slane %v1635, 7
          %v1637 = vsel %vm394, %v1636, %v1635
          %v1639 = vadd.f32 %v1622, %v1637
          %s1640 = sld [smem:[#allocation3 + $0x30]]
          %v1641 = vstv %s1640
          %1642 = vrot.lane.b32.xlu0 %v314, 77
          %v1643 = vpop.permute.xlu0 %1642
          %v1644 = vrot.slane %v1643, 1
          %v1645 = vrot.slane %v1643, 2
          %v1646 = vsel %vm367, %v1644, %v1645
          %v1648 = vmul.f32 %v1641, %v1646
          %1650 = vrot.lane.b32.xlu0 %v1648, 83
          %v1651 = vpop.permute.xlu0 %1650
          %v1652 = vrot.slane %v1651, 7
          %v1653 = vsel %vm394, %v1652, %v1651
          %v1655 = vadd.f32 %v1639, %v1653
          %s1656 = sld [smem:[#allocation3 + $0x37]]
          %v1657 = vstv %s1656
          %v1658 = vmul.f32 %v1657, %v405
          %v1659 = vadd.f32 %v1655, %v1658
          %s1660 = sld [smem:[#allocation3 + $0x3e]]
          %v1661 = vstv %s1660
          %v1662 = vmul.f32 %v1661, %v405
          %1664 = vrot.lane.b32.xlu0 %v1662, 112
          %v1665 = vpop.permute.xlu0 %1664
          %v1666 = vrot.slane %v1665, 1
          %v1667 = vsel %vm326, %v1665, %v1666
          %v1669 = vadd.f32 %v1659, %v1667
          %s1670 = sld [smem:[#allocation3 + $0x45]]
          %v1671 = vstv %s1670
          %v1672 = vmul.f32 %v1671, %v405
          %1674 = vrot.lane.b32.xlu0 %v1672, 96
          %v1675 = vpop.permute.xlu0 %1674
          %v1676 = vrot.slane %v1675, 1
          %v1677 = vsel %vm337, %v1675, %v1676
          %v1679 = vadd.f32 %v1669, %v1677
          %s1680 = sld [smem:[#allocation3 + $0x4c]]
          %v1681 = vstv %s1680
          %1682 = vrot.lane.b32.xlu0 %v405, 125
          %v1683 = vpop.permute.xlu0 %1682
          %v1684 = vrot.slane %v1683, 1
          %v1685 = vrot.slane %v1683, 2
          %v1686 = vsel %vm1595, %v1684, %v1685
          %v1688 = vmul.f32 %v1681, %v1686
          %1690 = vrot.lane.b32.xlu0 %v1688, 83
          %v1691 = vpop.permute.xlu0 %1690
          %v1692 = vrot.slane %v1691, 7
          %v1693 = vsel %vm394, %v1692, %v1691
          %v1695 = vadd.f32 %v1679, %v1693
          %s1696 = sld [smem:[#allocation3 + $0x53]]
          %v1697 = vstv %s1696
          %1698 = vrot.lane.b32.xlu0 %v405, 109
          %v1699 = vpop.permute.xlu0 %1698
          %v1700 = vrot.slane %v1699, 1
          %v1701 = vrot.slane %v1699, 2
          %v1702 = vsel %vm1612, %v1700, %v1701
          %v1704 = vmul.f32 %v1697, %v1702
          %1706 = vrot.lane.b32.xlu0 %v1704, 83
          %v1707 = vpop.permute.xlu0 %1706
          %v1708 = vrot.slane %v1707, 7
          %v1709 = vsel %vm394, %v1708, %v1707
          %v1711 = vadd.f32 %v1695, %v1709
          %s1712 = sld [smem:[#allocation3 + $0x5a]]
          %v1713 = vstv %s1712
          %1714 = vrot.lane.b32.xlu0 %v405, 93
          %v1715 = vpop.permute.xlu0 %1714
          %v1716 = vrot.slane %v1715, 1
          %v1717 = vrot.slane %v1715, 2
          %v1718 = vsel %vm1629, %v1716, %v1717
          %v1720 = vmul.f32 %v1713, %v1718
          %1722 = vrot.lane.b32.xlu0 %v1720, 83
          %v1723 = vpop.permute.xlu0 %1722
          %v1724 = vrot.slane %v1723, 7
          %v1725 = vsel %vm394, %v1724, %v1723
          %v1727 = vadd.f32 %v1711, %v1725
          %s1728 = sld [smem:[#allocation3 + $0x61]]
          %v1729 = vstv %s1728
          %1730 = vrot.lane.b32.xlu0 %v405, 77
          %v1731 = vpop.permute.xlu0 %1730
          %v1732 = vrot.slane %v1731, 1
          %v1733 = vrot.slane %v1731, 2
          %v1734 = vsel %vm367, %v1732, %v1733
          %v1736 = vmul.f32 %v1729, %v1734
          %1738 = vrot.lane.b32.xlu0 %v1736, 83
          %v1739 = vpop.permute.xlu0 %1738
          %v1740 = vrot.slane %v1739, 7
          %v1741 = vsel %vm394, %v1740, %v1739
          %v1743 = vadd.f32 %v1727, %v1741
          %v1745 = vlaneseq
          %v1746 = vshrl.u32 %v1745, 7
          %v1747 = vsub.s32 0, %v1746
          %v1748 = vrot.slane %v1743, %v1747
          %v1749 = vlaneseq
          %v1750 = vshrl.u32 %v1749, 7
          %v1751 = vsub.s32 1, %v1750
          %v1752 = vrot.slane %v1743, %v1751
          %v1753 = vlaneseq
          %v1754 = vshrl.u32 %v1753, 7
          %v1755 = vsub.s32 2, %v1754
          %v1756 = vrot.slane %v1743, %v1755
          %1757 = vrot.lane.b32.xlu0 %v1748, 45
          %v1758 = vpop.permute.xlu0 %1757
          %1759 = vrot.lane.b32.xlu0 %v1752, 45
          %v1760 = vpop.permute.xlu0 %1759
          %1761 = vrot.lane.b32.xlu0 %v1756, 45
          %v1762 = vpop.permute.xlu0 %1761
          %vm1763 = vcmask 367616
          %v1764 = vsel %vm1763, %v1758, %v1760
          %v1765 = vsel %vm1763, %v1760, %v1762
          %v1768 = vsel %vm1563, %v1764, 0.0
          %v1769 = vsel %vm1564, %v1765, 0.0
          %v1770 = vadd.f32 %v1555, %v1768
          %v1771 = vadd.f32 %v1556, %v1769
          %v1772 = vxor.u32 %v1770, 2147483648
          %v1773 = vxor.u32 %v1771, 2147483648
          %v1774 = vmul.f32 %v1772, 1.442695
          %v1775 = vpow.pop %v1774
          %v1776 = vmul.f32 %v1773, 1.442695
          %v1777 = vpow.pop %v1776
          %v1778 = vadd.f32 %v1775, 1.0
          %v1779 = vadd.f32 %v1777, 1.0
          %v1780 = vrcp.pop %v1778
          %v1781 = vmul.f32 1.0, %v1780
          %v1782 = vrcp.pop %v1779
          %v1783 = vmul.f32 1.0, %v1782
          %v1786 = vcombine.low %v1781, %v1783
          %v1788 = vunpack.c.l.s4 1966171168
          %v1789 = vunpack.c.0.s8 %v1788
          %v1790 = vlaneseq
          %v1791 = vshrl.u32 %v1790, 7
          %v1792 = vsub.s32 %v1789, %v1791
          %v1793 = vrot.slane %v1786, %v1792
          %v1795 = vunpack.c.l.s4 1966171168
          %v1796 = vunpack.c.0.s8 %v1795
          %v1797 = vlaneseq
          %v1798 = vshrl.u32 %v1797, 7
          %v1799 = vsub.s32 %v1796, %v1798
          %v1800 = vrot.slane %v1793, %v1799
          %1802 = vst.msk [vmem:[%s181] sm:$0x3] %vm252, %v1800
        $region40: #{spatial_attention.1} parent=27 // pred_fallthru
          _
        %p1803 = scmp.lt.s32.totalorder %s18, 1
        %s1804 = scalar_select %p1803, %s18, 1
        %s1805 = smul.addr %s1804, 2
        %s1806 = scalar_lea.vmem %s2, %s1805
        // Predicated region
        $region41: #{spatial_attention.1} parent=27 // pred_check
          %p1807 = pneg %p93
        $region42: #{spatial_attention.1} parent=27 // pred_check_branch
          %1809 = sbr.rel (%p1807) target = $region44
        $region43: #{spatial_attention.1} parent=27 // pred_region
          _
        $region44: #{spatial_attention.1} parent=27 // pred_fallthru
          _
      $region28: #{spatial_attention.1} parent=5 // pred_fallthru
        _
      %p1810 = scmp.le.s32.totalorder 2, %s9
      // Predicated region
      $region45: #{spatial_attention.1} parent=5 // pred_check
        %p1811 = pneg %p1810
      $region46: #{spatial_attention.1} parent=5 // pred_check_branch
        %1813 = sbr.rel (%p1811) target = $region48
      $region47: #{spatial_attention.1} parent=5 // pred_region
        %s1814 = ssub.s32 %s9, 2
        // Predicated region
        $region49: #{spatial_attention.1} parent=47 // pred_check
          %p1815 = pneg %p99
        $region50: #{spatial_attention.1} parent=47 // pred_check_branch
          %1817 = sbr.rel (%p1815) target = $region52
        $region51: #{spatial_attention.1} parent=47 // pred_region
          %p1818 = scmp.lt.s32.totalorder %s20, 1
          %s1819 = scalar_select %p1818, %s20, 1
          %s1820 = smul.addr %s1819, 2
          %s1821 = scalar_lea.vmem %s2, %s1820
        $region52: #{spatial_attention.1} parent=47 // pred_fallthru
          _
      $region48: #{spatial_attention.1} parent=5 // pred_fallthru
        _
    $region6: #{spatial_attention.1} parent=1 // loop_footer
      %s13 = sadd.s32 1, %s9
    $region7: #{spatial_attention.1} parent=1 // loop_footer_branch
      %8 = sbr.rel target = $region3
    $region8: #{spatial_attention.1} parent=1 // loop_exit
      _
    %1822 = vsyncpa [#allocation4], 1
    %s1823 = scalar_lea.sflag [#allocation4], 1
    %1824 = vsyncpa %s1823, 1

</llo_original>
